<compile_context>
chip_gen: v5e
topology: v5e:2x2
jax: 0.10.0
libtpu: 0.0.40
codegen_flags: <defaults>
</compile_context>

<pallas_src>
import functools
import math

import jax
import jax.numpy as jnp
from jax import lax
from jax.experimental import pallas as pl
from jax.experimental.pallas import tpu as pltpu

_LN_EPS = 1e-5
_NEG_INF = -1e30  # finite mask value (avoids NaN on fully-masked / padded rows)


def _clip_layer_kernel(
    x_ref,                       # (Bt, S, E)   activations (S padded to mult of 8)
    g1_ref, b1_ref,              # (1, E)       layernorm_1 gamma / beta        (f32)
    wqkv_ref, bqkv_ref,          # (E, 3E) bf16, (1, 3E) f32   fused q|k|v projection
    wo_ref, bo_ref,              # (E, E)  bf16, (1, E)  f32   out_proj
    g2_ref, b2_ref,              # (1, E)       layernorm_2 gamma / beta        (f32)
    w1_ref, b1l_ref,             # (E, 4E) bf16, (1, 4E) f32   linear_1
    w2_ref, b2l_ref,             # (4E, E) bf16, (1, E)  f32   linear_2
    o_ref,                       # (Bt, S, E)
    *, num_heads,
):
    Bt, S, E = x_ref.shape
    H = num_heads
    dh = E // H
    N = Bt * S

    # (Bt, S, E) -> (N, E): leading-dim merge; S % 8 == 0 so this is a layout no-op.
    x_in = x_ref[...].astype(jnp.float32).reshape(N, E)

    # ---------------- LayerNorm 1 ----------------
    mu = jnp.mean(x_in, axis=-1, keepdims=True)
    var = jnp.mean((x_in - mu) ** 2, axis=-1, keepdims=True)
    xn = (x_in - mu) * lax.rsqrt(var + _LN_EPS) * g1_ref[...] + b1_ref[...]

    # ---------------- Multi-head self-attention (causal) ----------------
    # Fused QKV projection: one (N,E)x(E,3E) MXU pass, bf16 in / f32 accumulate.
    qkv = jnp.dot(xn.astype(jnp.bfloat16), wqkv_ref[...],
                  preferred_element_type=jnp.float32) + bqkv_ref[...]       # (N, 3E)
    scale = 1.0 / math.sqrt(dh)
    q = qkv[:, 0 * E:1 * E] * scale          # fold 1/sqrt(dh) into q once
    k = qkv[:, 1 * E:2 * E]
    v = qkv[:, 2 * E:3 * E]

    # Head split: lane slices stacked along a new leading axis; the surrounding
    # reshapes only split/merge leading dims (layout no-ops since S % 8 == 0).
    # TODO(synk): replace the lane-slice stack with a pltpu.einshape-based split
    # once Mosaic's lane-splitting reshape/transpose path is guaranteed to lower.
    def to_heads(t):
        t = t.reshape(Bt, S, E)
        heads = [t[:, :, h * dh:(h + 1) * dh] for h in range(H)]
        return jnp.stack(heads, axis=1).reshape(Bt * H, S, dh).astype(jnp.bfloat16)

    q3, k3, v3 = to_heads(q), to_heads(k), to_heads(v)            # (Bt*H, S, dh)

    # Batched-over-(batch*head) contraction: single einsum, f32 accumulation.
    s = jnp.einsum("bqd,bkd->bqk", q3, k3,
                   preferred_element_type=jnp.float32)            # (Bt*H, S, S)

    # Causal mask built once at (S, S) and broadcast into the where (Hx fewer
    # iota/compare temporaries). Padded keys (col >= real S) are col > row for
    # every real query row, so they are masked automatically.
    row = lax.broadcasted_iota(jnp.int32, (S, S), 0)
    col = lax.broadcasted_iota(jnp.int32, (S, S), 1)
    s = jnp.where((col > row)[None, :, :], _NEG_INF, s)

    s_max = jnp.max(s, axis=-1, keepdims=True)
    p = jnp.exp(s - s_max)
    denom = jnp.sum(p, axis=-1, keepdims=True)
    p = p * pl.reciprocal(denom, approx=True)                     # EUP reciprocal

    o3 = jnp.einsum("bqk,bkd->bqd", p.astype(jnp.bfloat16), v3,
                    preferred_element_type=jnp.float32)           # (Bt*H, S, dh)
    o3 = o3.reshape(Bt, H, S, dh)
    attn = jnp.concatenate([o3[:, h] for h in range(H)], axis=-1)  # (Bt, S, E)
    attn = attn.reshape(N, E)

    attn = jnp.dot(attn.astype(jnp.bfloat16), wo_ref[...],
                   preferred_element_type=jnp.float32) + bo_ref[...]
    x2 = attn + x_in                                              # residual 1

    # ---------------- LayerNorm 2 + MLP ----------------
    mu2 = jnp.mean(x2, axis=-1, keepdims=True)
    var2 = jnp.mean((x2 - mu2) ** 2, axis=-1, keepdims=True)
    x2n = (x2 - mu2) * lax.rsqrt(var2 + _LN_EPS) * g2_ref[...] + b2_ref[...]

    h1 = jnp.dot(x2n.astype(jnp.bfloat16), w1_ref[...],
                 preferred_element_type=jnp.float32) + b1l_ref[...]        # (N, 4E)
    # tanh-approx GELU: the transcendental runs on the EUP slot instead of an erf
    # polynomial on the VALU; verified within the 5e-2 tolerance vs exact-erf GELU.
    c0 = math.sqrt(2.0 / math.pi)
    h1 = 0.5 * h1 * (1.0 + jnp.tanh(c0 * (h1 + 0.044715 * (h1 * h1 * h1))))
    h2 = jnp.dot(h1.astype(jnp.bfloat16), w2_ref[...],
                 preferred_element_type=jnp.float32) + b2l_ref[...]        # (N, E)

    o_ref[...] = (h2 + x2).reshape(Bt, S, E).astype(o_ref.dtype)  # residual 2


# ----------------------------- sizing heuristics -----------------------------

def _physical_vmem_bytes():
    try:
        return int(pltpu.get_tpu_info().vmem_capacity_bytes)
    except Exception:
        return 64 << 20            # conservative fallback = v7x per-TensorCore VMEM


def _act_bytes_per_row(S, E, H):
    """Rough f32 bytes of live activation temporaries for one batch row."""
    return 4 * (
        3 * H * S * S              # scores / probs (+ bf16 copy)
        + 2 * S * 3 * E            # fused qkv (+ bf16 copy)
        + 3 * S * E                # per-head q/k/v copies
        + 3 * S * 4 * E            # MLP hidden + GELU temporaries
        + 10 * S * E               # LN / residual / attention temporaries
    )


def _pick_bt(B, S, E, H, param_bytes, vmem_ceiling):
    """Largest divisor of B that fits the VMEM budget (<=8); keep >=2 grid steps
    when B >= 2 so both v7x TensorCores receive work via the parallel grid axis."""
    per_row = _act_bytes_per_row(S, E, H)
    io_row = 2 * 2 * S * E * 4                 # double-buffered in/out blocks
    avail = vmem_ceiling - 2 * param_bytes - (4 << 20)
    cap = max(1, avail // max(per_row + io_row, 1))
    bt = 1
    for cand in range(1, B + 1):
        if cand > min(8, cap):
            break
        if B % cand == 0:
            bt = cand
    if B >= 2 and B // bt < 2:
        for cand in range(bt, 0, -1):
            if B % cand == 0 and B // cand >= 2:
                bt = cand
                break
    return bt


def _vmem_limit_bytes(bt, S, E, H, param_bytes, vmem_ceiling):
    budget = (2 * param_bytes                         # weights (double-buffered specs)
              + bt * _act_bytes_per_row(S, E, H)
              + 2 * 2 * bt * S * E * 4                # double-buffered in/out blocks
              + (8 << 20))                            # compiler scratch headroom
    return int(min(max(budget, 32 << 20), vmem_ceiling))


def _const_index_map(ndim):
    return lambda b: (0,) * ndim


# ----------------------------- call construction -----------------------------

@functools.lru_cache(maxsize=None)
def _build_clip_layer_fn(B, S_in, E, H, x_dtype_name, param_sig):
    s_pad = int(pl.cdiv(S_in, 8) * 8)               # dense sublane stores / reduces
    param_bytes = sum(math.prod(shape) * jnp.dtype(dt).itemsize
                      for shape, dt in param_sig)
    vmem_ceiling = int(_physical_vmem_bytes() * 0.85)   # ~54 MiB on v7x, ~109 MiB on v5e/v6e
    bt = _pick_bt(B, s_pad, E, H, param_bytes, vmem_ceiling)
    vmem_bytes = _vmem_limit_bytes(bt, s_pad, E, H, param_bytes, vmem_ceiling)

    kernel = functools.partial(_clip_layer_kernel, num_heads=H)

    in_specs = [pl.BlockSpec((bt, s_pad, E), lambda b: (b, 0, 0))]
    # Constant-index weight blocks: the pipeline only fetches them once (block
    # index never changes); the second buffer is allocation-only and is already
    # accounted for in the VMEM budget / Bt cap above.
    for shape, _ in param_sig:
        in_specs.append(pl.BlockSpec(shape, _const_index_map(len(shape))))

    x_dtype = jnp.dtype(x_dtype_name)
    call = pl.pallas_call(
        kernel,
        out_shape=jax.ShapeDtypeStruct((B, s_pad, E), x_dtype),
        grid=(B // bt,),
        in_specs=in_specs,
        out_specs=pl.BlockSpec((bt, s_pad, E), lambda b: (b, 0, 0)),
        compiler_params=pltpu.CompilerParams(
            dimension_semantics=("parallel",),
            vmem_limit_bytes=vmem_bytes,
        ),
    )

    def fn(x, *params):
        if s_pad != S_in:
            x = jnp.pad(x, ((0, 0), (0, s_pad - S_in), (0, 0)))
        out = call(x, *params)
        if s_pad != S_in:
            out = out[:, :S_in, :]
        return out

    return jax.jit(fn)


def clip_layer_pallas(x, params, num_heads):
    """x: (B, S, E); params: list from prepare_params()."""
    B, S, E = x.shape
    params = tuple(params)
    param_sig = tuple((tuple(int(d) for d in p.shape), jnp.dtype(p.dtype).name)
                      for p in params)
    fn = _build_clip_layer_fn(B, S, E, num_heads, jnp.dtype(x.dtype).name, param_sig)
    return fn(x, *params)


# ----------------------------- host-side parameter handling -----------------------------

def init_params(key, num_embed):
    """Deterministic synthetic parameters in PyTorch layout (Linear weight = (out, in))."""
    E = num_embed
    ks = jax.random.split(key, 16)
    sc = 0.02

    def lin(kw, kb, fan_in, fan_out):
        w = sc * jax.random.normal(kw, (fan_out, fan_in), jnp.float32)
        b = sc * jax.random.normal(kb, (fan_out,), jnp.float32)
        return w, b

    p = {}
    p["ln1_g"] = 1.0 + 0.1 * jax.random.normal(ks[0], (E,), jnp.float32)
    p["ln1_b"] = 0.1 * jax.random.normal(ks[1], (E,), jnp.float32)
    p["wq"], p["bq"] = lin(ks[2], ks[3], E, E)
    p["wk"], p["bk"] = lin(ks[4], ks[5], E, E)
    p["wv"], p["bv"] = lin(ks[6], ks[7], E, E)
    p["wo"], p["bo"] = lin(ks[8], ks[9], E, E)
    p["ln2_g"] = 1.0 + 0.1 * jax.random.normal(ks[10], (E,), jnp.float32)
    p["ln2_b"] = 0.1 * jax.random.normal(ks[11], (E,), jnp.float32)
    p["w1"], p["b1"] = lin(ks[12], ks[13], E, 4 * E)
    p["w2"], p["b2"] = lin(ks[14], ks[15], 4 * E, E)
    return p


def prepare_params(p):
    """PyTorch layout -> kernel layout: (in, out) weights in bf16, fused QKV,
    biases / LayerNorm params as (1, N) f32 rows."""
    def w_bf16(w):
        return jnp.asarray(w.T, jnp.bfloat16)

    def row(b):
        return jnp.asarray(b, jnp.float32).reshape(1, -1)

    wqkv = jnp.concatenate([p["wq"].T, p["wk"].T, p["wv"].T], axis=-1).astype(jnp.bfloat16)
    bqkv = jnp.concatenate([p["bq"], p["bk"], p["bv"]], axis=-1).reshape(1, -1).astype(jnp.float32)
    return [
        row(p["ln1_g"]), row(p["ln1_b"]),
        wqkv, bqkv,
        w_bf16(p["wo"]), row(p["bo"]),
        row(p["ln2_g"]), row(p["ln2_b"]),
        w_bf16(p["w1"]), row(p["b1"]),
        w_bf16(p["w2"]), row(p["b2"]),
    ]


def clip_layer_ref(x, p, num_heads):
    """Pure-JAX f32 reference matching the PyTorch CLIP_layer forward."""
    B, S, E = x.shape
    dh = E // num_heads

    def ln(v, g, b):
        mu = jnp.mean(v, axis=-1, keepdims=True)
        var = jnp.mean((v - mu) ** 2, axis=-1, keepdims=True)
        return (v - mu) / jnp.sqrt(var + _LN_EPS) * g + b

    res = x
    h = ln(x, p["ln1_g"], p["ln1_b"])
    q = h @ p["wq"].T + p["bq"]
    k = h @ p["wk"].T + p["bk"]
    v = h @ p["wv"].T + p["bv"]

    def split(t):
        return t.reshape(B, S, num_heads, dh).transpose(0, 2, 1, 3)

    q, k, v = split(q), split(k), split(v)
    s = jnp.einsum("bhqd,bhkd->bhqk", q, k)
    mask = jnp.triu(jnp.ones((S, S), bool), k=1)
    s = jnp.where(mask, -jnp.inf, s)
    s = s / math.sqrt(dh)
    a = jax.nn.softmax(s, axis=-1)
    o = jnp.einsum("bhqk,bhkd->bhqd", a, v).transpose(0, 2, 1, 3).reshape(B, S, E)
    o = o @ p["wo"].T + p["bo"]
    x = o + res

    res = x
    h = ln(x, p["ln2_g"], p["ln2_b"])
    h = h @ p["w1"].T + p["b1"]
    h = 0.5 * h * (1.0 + lax.erf(h / math.sqrt(2.0)))
    h = h @ p["w2"].T + p["b2"]
    return h + res


if __name__ == "__main__":
    B, S, E, H = 2, 8, 32, 4
    key = jax.random.PRNGKey(0)
    kx, kp = jax.random.split(key)
    x = jax.random.normal(kx, (B, S, E), jnp.float32)

    torch_params = init_params(kp, E)
    params = prepare_params(torch_params)

    out = clip_layer_pallas(x, params, num_heads=H)
    out = jax.block_until_ready(out)
    assert out.shape == (B, S, E)

    ref = clip_layer_ref(x, torch_params, H)
    max_err = float(jnp.max(jnp.abs(out - ref)))
    assert max_err < 5e-2, f"max abs error vs reference too large: {max_err}"
    print("KERNEL_OK")
</pallas_src>

<mosaic_0001>
module attributes {stable_mosaic.version = 11 : i64} {
  func.func @_clip_layer_kernel(%arg0: i32, %arg1: memref<1x8x32xf32, #tpu.memory_space<vmem>>, %arg2: memref<1x32xf32, #tpu.memory_space<vmem>>, %arg3: memref<1x32xf32, #tpu.memory_space<vmem>>, %arg4: memref<32x96xbf16, #tpu.memory_space<vmem>>, %arg5: memref<1x96xf32, #tpu.memory_space<vmem>>, %arg6: memref<32x32xbf16, #tpu.memory_space<vmem>>, %arg7: memref<1x32xf32, #tpu.memory_space<vmem>>, %arg8: memref<1x32xf32, #tpu.memory_space<vmem>>, %arg9: memref<1x32xf32, #tpu.memory_space<vmem>>, %arg10: memref<32x128xbf16, #tpu.memory_space<vmem>>, %arg11: memref<1x128xf32, #tpu.memory_space<vmem>>, %arg12: memref<128x32xbf16, #tpu.memory_space<vmem>>, %arg13: memref<1x32xf32, #tpu.memory_space<vmem>>, %arg14: memref<1x8x32xf32, #tpu.memory_space<vmem>>) attributes {dimension_semantics = [#tpu.dimension_semantics<parallel>], iteration_bounds = array<i64: 2>, scalar_prefetch = 0 : i64, scratch_operands = 0 : i64, tpu.core_type = #tpu.core_type<tc>, window_params = [{transform_indices = @transform_0, window_bounds = array<i64: 1, 8, 32>}, {pipeline_mode = #tpu.pipeline_mode<synchronous>, transform_indices = @transform_1, window_bounds = array<i64: 1, 32>}, {pipeline_mode = #tpu.pipeline_mode<synchronous>, transform_indices = @transform_2, window_bounds = array<i64: 1, 32>}, {pipeline_mode = #tpu.pipeline_mode<synchronous>, transform_indices = @transform_3, window_bounds = array<i64: 32, 96>}, {pipeline_mode = #tpu.pipeline_mode<synchronous>, transform_indices = @transform_4, window_bounds = array<i64: 1, 96>}, {pipeline_mode = #tpu.pipeline_mode<synchronous>, transform_indices = @transform_5, window_bounds = array<i64: 32, 32>}, {pipeline_mode = #tpu.pipeline_mode<synchronous>, transform_indices = @transform_6, window_bounds = array<i64: 1, 32>}, {pipeline_mode = #tpu.pipeline_mode<synchronous>, transform_indices = @transform_7, window_bounds = array<i64: 1, 32>}, {pipeline_mode = #tpu.pipeline_mode<synchronous>, transform_indices = @transform_8, window_bounds = array<i64: 1, 32>}, {pipeline_mode = #tpu.pipeline_mode<synchronous>, transform_indices = @transform_9, window_bounds = array<i64: 32, 128>}, {pipeline_mode = #tpu.pipeline_mode<synchronous>, transform_indices = @transform_10, window_bounds = array<i64: 1, 128>}, {pipeline_mode = #tpu.pipeline_mode<synchronous>, transform_indices = @transform_11, window_bounds = array<i64: 128, 32>}, {pipeline_mode = #tpu.pipeline_mode<synchronous>, transform_indices = @transform_12, window_bounds = array<i64: 1, 32>}, {transform_indices = @transform_13, window_bounds = array<i64: 1, 8, 32>}]} {
    %c0 = arith.constant 0 : index
    %c0_0 = arith.constant 0 : index
    %c0_1 = arith.constant 0 : index
    %0 = vector.load %arg1[%c0, %c0_0, %c0_1] : memref<1x8x32xf32, #tpu.memory_space<vmem>>, vector<1x8x32xf32>
    %1 = vector.shape_cast %0 : vector<1x8x32xf32> to vector<8x32xf32>
    %cst = arith.constant dense<0.000000e+00> : vector<8xf32>
    %2 = vector.multi_reduction <add>, %1, %cst [1] : vector<8x32xf32> to vector<8xf32>
    %3 = vector.shape_cast %2 : vector<8xf32> to vector<8x1xf32>
    %cst_2 = arith.constant 3.200000e+01 : f32
    %4 = vector.broadcast %cst_2 : f32 to vector<8x1xf32>
    %5 = arith.divf %3, %4 : vector<8x1xf32>
    %6 = vector.broadcast %5 : vector<8x1xf32> to vector<8x32xf32>
    %7 = arith.subf %1, %6 : vector<8x32xf32>
    %8 = arith.mulf %7, %7 : vector<8x32xf32>
    %cst_3 = arith.constant dense<0.000000e+00> : vector<8xf32>
    %9 = vector.multi_reduction <add>, %8, %cst_3 [1] : vector<8x32xf32> to vector<8xf32>
    %10 = vector.shape_cast %9 : vector<8xf32> to vector<8x1xf32>
    %cst_4 = arith.constant 3.200000e+01 : f32
    %11 = vector.broadcast %cst_4 : f32 to vector<8x1xf32>
    %12 = arith.divf %10, %11 : vector<8x1xf32>
    %13 = vector.broadcast %5 : vector<8x1xf32> to vector<8x32xf32>
    %14 = arith.subf %1, %13 : vector<8x32xf32>
    %cst_5 = arith.constant 9.99999974E-6 : f32
    %15 = vector.broadcast %cst_5 : f32 to vector<8x1xf32>
    %16 = arith.addf %12, %15 : vector<8x1xf32>
    %17 = math.rsqrt %16 : vector<8x1xf32>
    %18 = vector.broadcast %17 : vector<8x1xf32> to vector<8x32xf32>
    %19 = arith.mulf %14, %18 : vector<8x32xf32>
    %c0_6 = arith.constant 0 : index
    %c0_7 = arith.constant 0 : index
    %20 = vector.load %arg2[%c0_6, %c0_7] : memref<1x32xf32, #tpu.memory_space<vmem>>, vector<1x32xf32>
    %21 = vector.broadcast %20 : vector<1x32xf32> to vector<8x32xf32>
    %22 = arith.mulf %19, %21 : vector<8x32xf32>
    %c0_8 = arith.constant 0 : index
    %c0_9 = arith.constant 0 : index
    %23 = vector.load %arg3[%c0_8, %c0_9] : memref<1x32xf32, #tpu.memory_space<vmem>>, vector<1x32xf32>
    %24 = vector.broadcast %23 : vector<1x32xf32> to vector<8x32xf32>
    %25 = arith.addf %22, %24 : vector<8x32xf32>
    %26 = arith.truncf %25 : vector<8x32xf32> to vector<8x32xbf16>
    %c0_10 = arith.constant 0 : index
    %c0_11 = arith.constant 0 : index
    %27 = vector.load %arg4[%c0_10, %c0_11] : memref<32x96xbf16, #tpu.memory_space<vmem>>, vector<32x96xbf16>
    %cst_12 = arith.constant dense<0.000000e+00> : vector<8x96xf32>
    %28 = tpu.matmul %26, %27, %cst_12 {dimension_numbers = #tpu.dot_dimension_numbers<[1], [0], [0], [1], [0, 0, 1, 1], [], []>} : vector<8x32xbf16>, vector<32x96xbf16>, vector<8x96xf32> -> vector<8x96xf32>
    %c0_13 = arith.constant 0 : index
    %c0_14 = arith.constant 0 : index
    %29 = vector.load %arg5[%c0_13, %c0_14] : memref<1x96xf32, #tpu.memory_space<vmem>>, vector<1x96xf32>
    %30 = vector.broadcast %29 : vector<1x96xf32> to vector<8x96xf32>
    %31 = arith.addf %28, %30 : vector<8x96xf32>
    %32 = vector.extract_strided_slice %31 {offsets = [0, 0], sizes = [8, 32], strides = [1, 1]} : vector<8x96xf32> to vector<8x32xf32>
    %cst_15 = arith.constant 0.353553385 : f32
    %33 = vector.broadcast %cst_15 : f32 to vector<8x32xf32>
    %34 = arith.mulf %32, %33 : vector<8x32xf32>
    %35 = vector.extract_strided_slice %31 {offsets = [0, 32], sizes = [8, 32], strides = [1, 1]} : vector<8x96xf32> to vector<8x32xf32>
    %36 = vector.extract_strided_slice %31 {offsets = [0, 64], sizes = [8, 32], strides = [1, 1]} : vector<8x96xf32> to vector<8x32xf32>
    %37 = vector.shape_cast %34 : vector<8x32xf32> to vector<1x8x32xf32>
    %38 = vector.extract_strided_slice %37 {offsets = [0, 0, 0], sizes = [1, 8, 8], strides = [1, 1, 1]} : vector<1x8x32xf32> to vector<1x8x8xf32>
    %39 = vector.extract_strided_slice %37 {offsets = [0, 0, 8], sizes = [1, 8, 8], strides = [1, 1, 1]} : vector<1x8x32xf32> to vector<1x8x8xf32>
    %40 = vector.extract_strided_slice %37 {offsets = [0, 0, 16], sizes = [1, 8, 8], strides = [1, 1, 1]} : vector<1x8x32xf32> to vector<1x8x8xf32>
    %41 = vector.extract_strided_slice %37 {offsets = [0, 0, 24], sizes = [1, 8, 8], strides = [1, 1, 1]} : vector<1x8x32xf32> to vector<1x8x8xf32>
    %42 = vector.shape_cast %38 : vector<1x8x8xf32> to vector<1x1x8x8xf32>
    %43 = vector.shape_cast %39 : vector<1x8x8xf32> to vector<1x1x8x8xf32>
    %44 = vector.shape_cast %40 : vector<1x8x8xf32> to vector<1x1x8x8xf32>
    %45 = vector.shape_cast %41 : vector<1x8x8xf32> to vector<1x1x8x8xf32>
    %46 = tpu.concatenate %42, %43, %44, %45 in 1 : vector<1x1x8x8xf32>, vector<1x1x8x8xf32>, vector<1x1x8x8xf32>, vector<1x1x8x8xf32> -> vector<1x4x8x8xf32>
    %47 = vector.shape_cast %46 : vector<1x4x8x8xf32> to vector<4x8x8xf32>
    %48 = arith.truncf %47 : vector<4x8x8xf32> to vector<4x8x8xbf16>
    %49 = vector.shape_cast %35 : vector<8x32xf32> to vector<1x8x32xf32>
    %50 = vector.extract_strided_slice %49 {offsets = [0, 0, 0], sizes = [1, 8, 8], strides = [1, 1, 1]} : vector<1x8x32xf32> to vector<1x8x8xf32>
    %51 = vector.extract_strided_slice %49 {offsets = [0, 0, 8], sizes = [1, 8, 8], strides = [1, 1, 1]} : vector<1x8x32xf32> to vector<1x8x8xf32>
    %52 = vector.extract_strided_slice %49 {offsets = [0, 0, 16], sizes = [1, 8, 8], strides = [1, 1, 1]} : vector<1x8x32xf32> to vector<1x8x8xf32>
    %53 = vector.extract_strided_slice %49 {offsets = [0, 0, 24], sizes = [1, 8, 8], strides = [1, 1, 1]} : vector<1x8x32xf32> to vector<1x8x8xf32>
    %54 = vector.shape_cast %50 : vector<1x8x8xf32> to vector<1x1x8x8xf32>
    %55 = vector.shape_cast %51 : vector<1x8x8xf32> to vector<1x1x8x8xf32>
    %56 = vector.shape_cast %52 : vector<1x8x8xf32> to vector<1x1x8x8xf32>
    %57 = vector.shape_cast %53 : vector<1x8x8xf32> to vector<1x1x8x8xf32>
    %58 = tpu.concatenate %54, %55, %56, %57 in 1 : vector<1x1x8x8xf32>, vector<1x1x8x8xf32>, vector<1x1x8x8xf32>, vector<1x1x8x8xf32> -> vector<1x4x8x8xf32>
    %59 = vector.shape_cast %58 : vector<1x4x8x8xf32> to vector<4x8x8xf32>
    %60 = arith.truncf %59 : vector<4x8x8xf32> to vector<4x8x8xbf16>
    %61 = vector.shape_cast %36 : vector<8x32xf32> to vector<1x8x32xf32>
    %62 = vector.extract_strided_slice %61 {offsets = [0, 0, 0], sizes = [1, 8, 8], strides = [1, 1, 1]} : vector<1x8x32xf32> to vector<1x8x8xf32>
    %63 = vector.extract_strided_slice %61 {offsets = [0, 0, 8], sizes = [1, 8, 8], strides = [1, 1, 1]} : vector<1x8x32xf32> to vector<1x8x8xf32>
    %64 = vector.extract_strided_slice %61 {offsets = [0, 0, 16], sizes = [1, 8, 8], strides = [1, 1, 1]} : vector<1x8x32xf32> to vector<1x8x8xf32>
    %65 = vector.extract_strided_slice %61 {offsets = [0, 0, 24], sizes = [1, 8, 8], strides = [1, 1, 1]} : vector<1x8x32xf32> to vector<1x8x8xf32>
    %66 = vector.shape_cast %62 : vector<1x8x8xf32> to vector<1x1x8x8xf32>
    %67 = vector.shape_cast %63 : vector<1x8x8xf32> to vector<1x1x8x8xf32>
    %68 = vector.shape_cast %64 : vector<1x8x8xf32> to vector<1x1x8x8xf32>
    %69 = vector.shape_cast %65 : vector<1x8x8xf32> to vector<1x1x8x8xf32>
    %70 = tpu.concatenate %66, %67, %68, %69 in 1 : vector<1x1x8x8xf32>, vector<1x1x8x8xf32>, vector<1x1x8x8xf32>, vector<1x1x8x8xf32> -> vector<1x4x8x8xf32>
    %71 = vector.shape_cast %70 : vector<1x4x8x8xf32> to vector<4x8x8xf32>
    %72 = arith.truncf %71 : vector<4x8x8xf32> to vector<4x8x8xbf16>
    "tpu.trace_start"() <{level = 10 : i32, message = "bqd,bkd->bqk"}> : () -> ()
    %cst_16 = arith.constant dense<0.000000e+00> : vector<4x8x8xf32>
    %73 = tpu.matmul %48, %60, %cst_16 {dimension_numbers = #tpu.dot_dimension_numbers<[2], [2], [1], [1], [0, 0, 0, 1, 1, 1], [0], [0]>} : vector<4x8x8xbf16>, vector<4x8x8xbf16>, vector<4x8x8xf32> -> vector<4x8x8xf32>
    "tpu.trace_stop"() : () -> ()
    %74 = tpu.iota {dimensions = array<i32: 0>} : vector<8x8xi32>
    %75 = tpu.iota {dimensions = array<i32: 1>} : vector<8x8xi32>
    %76 = arith.cmpi sgt, %75, %74 : vector<8x8xi32>
    %77 = vector.shape_cast %76 : vector<8x8xi1> to vector<1x8x8xi1>
    %cst_17 = arith.constant -1.000000e+30 : f32
    %78 = vector.shape_cast %77 : vector<1x8x8xi1> to vector<1x8x8xi1>
    %79 = vector.broadcast %78 : vector<1x8x8xi1> to vector<4x8x8xi1>
    %80 = vector.broadcast %cst_17 : f32 to vector<4x8x8xf32>
    %81 = arith.select %79, %80, %73 : vector<4x8x8xi1>, vector<4x8x8xf32>
    %cst_18 = arith.constant dense<0xFF800000> : vector<4x8xf32>
    %82 = vector.multi_reduction <maximumf>, %81, %cst_18 [2] : vector<4x8x8xf32> to vector<4x8xf32>
    %83 = vector.shape_cast %82 : vector<4x8xf32> to vector<4x8x1xf32>
    %84 = vector.broadcast %83 : vector<4x8x1xf32> to vector<4x8x8xf32>
    %85 = arith.subf %81, %84 : vector<4x8x8xf32>
    %86 = math.exp %85 : vector<4x8x8xf32>
    %cst_19 = arith.constant dense<0.000000e+00> : vector<4x8xf32>
    %87 = vector.multi_reduction <add>, %86, %cst_19 [2] : vector<4x8x8xf32> to vector<4x8xf32>
    %88 = vector.shape_cast %87 : vector<4x8xf32> to vector<4x8x1xf32>
    %89 = tpu.reciprocal %88 {approx = true} : vector<4x8x1xf32> -> vector<4x8x1xf32>
    %90 = vector.broadcast %89 : vector<4x8x1xf32> to vector<4x8x8xf32>
    %91 = arith.mulf %86, %90 : vector<4x8x8xf32>
    %92 = arith.truncf %91 : vector<4x8x8xf32> to vector<4x8x8xbf16>
    "tpu.trace_start"() <{level = 10 : i32, message = "bqk,bkd->bqd"}> : () -> ()
    %cst_20 = arith.constant dense<0.000000e+00> : vector<4x8x8xf32>
    %93 = tpu.matmul %92, %72, %cst_20 {dimension_numbers = #tpu.dot_dimension_numbers<[2], [1], [1], [2], [0, 0, 0, 1, 1, 2], [0], [0]>} : vector<4x8x8xbf16>, vector<4x8x8xbf16>, vector<4x8x8xf32> -> vector<4x8x8xf32>
    "tpu.trace_stop"() : () -> ()
    %94 = vector.shape_cast %93 : vector<4x8x8xf32> to vector<1x4x8x8xf32>
    %95 = vector.extract_strided_slice %94 {offsets = [0, 0, 0, 0], sizes = [1, 1, 8, 8], strides = [1, 1, 1, 1]} : vector<1x4x8x8xf32> to vector<1x1x8x8xf32>
    %96 = vector.shape_cast %95 : vector<1x1x8x8xf32> to vector<1x8x8xf32>
    %97 = vector.extract_strided_slice %94 {offsets = [0, 1, 0, 0], sizes = [1, 1, 8, 8], strides = [1, 1, 1, 1]} : vector<1x4x8x8xf32> to vector<1x1x8x8xf32>
    %98 = vector.shape_cast %97 : vector<1x1x8x8xf32> to vector<1x8x8xf32>
    %99 = vector.extract_strided_slice %94 {offsets = [0, 2, 0, 0], sizes = [1, 1, 8, 8], strides = [1, 1, 1, 1]} : vector<1x4x8x8xf32> to vector<1x1x8x8xf32>
    %100 = vector.shape_cast %99 : vector<1x1x8x8xf32> to vector<1x8x8xf32>
    %101 = vector.extract_strided_slice %94 {offsets = [0, 3, 0, 0], sizes = [1, 1, 8, 8], strides = [1, 1, 1, 1]} : vector<1x4x8x8xf32> to vector<1x1x8x8xf32>
    %102 = vector.shape_cast %101 : vector<1x1x8x8xf32> to vector<1x8x8xf32>
    %103 = tpu.concatenate %96, %98, %100, %102 in 2 : vector<1x8x8xf32>, vector<1x8x8xf32>, vector<1x8x8xf32>, vector<1x8x8xf32> -> vector<1x8x32xf32>
    %104 = vector.shape_cast %103 : vector<1x8x32xf32> to vector<8x32xf32>
    %105 = arith.truncf %104 : vector<8x32xf32> to vector<8x32xbf16>
    %c0_21 = arith.constant 0 : index
    %c0_22 = arith.constant 0 : index
    %106 = vector.load %arg6[%c0_21, %c0_22] : memref<32x32xbf16, #tpu.memory_space<vmem>>, vector<32x32xbf16>
    %cst_23 = arith.constant dense<0.000000e+00> : vector<8x32xf32>
    %107 = tpu.matmul %105, %106, %cst_23 {dimension_numbers = #tpu.dot_dimension_numbers<[1], [0], [0], [1], [0, 0, 1, 1], [], []>} : vector<8x32xbf16>, vector<32x32xbf16>, vector<8x32xf32> -> vector<8x32xf32>
    %c0_24 = arith.constant 0 : index
    %c0_25 = arith.constant 0 : index
    %108 = vector.load %arg7[%c0_24, %c0_25] : memref<1x32xf32, #tpu.memory_space<vmem>>, vector<1x32xf32>
    %109 = vector.broadcast %108 : vector<1x32xf32> to vector<8x32xf32>
    %110 = arith.addf %107, %109 : vector<8x32xf32>
    %111 = arith.addf %110, %1 : vector<8x32xf32>
    %cst_26 = arith.constant dense<0.000000e+00> : vector<8xf32>
    %112 = vector.multi_reduction <add>, %111, %cst_26 [1] : vector<8x32xf32> to vector<8xf32>
    %113 = vector.shape_cast %112 : vector<8xf32> to vector<8x1xf32>
    %cst_27 = arith.constant 3.200000e+01 : f32
    %114 = vector.broadcast %cst_27 : f32 to vector<8x1xf32>
    %115 = arith.divf %113, %114 : vector<8x1xf32>
    %116 = vector.broadcast %115 : vector<8x1xf32> to vector<8x32xf32>
    %117 = arith.subf %111, %116 : vector<8x32xf32>
    %118 = arith.mulf %117, %117 : vector<8x32xf32>
    %cst_28 = arith.constant dense<0.000000e+00> : vector<8xf32>
    %119 = vector.multi_reduction <add>, %118, %cst_28 [1] : vector<8x32xf32> to vector<8xf32>
    %120 = vector.shape_cast %119 : vector<8xf32> to vector<8x1xf32>
    %cst_29 = arith.constant 3.200000e+01 : f32
    %121 = vector.broadcast %cst_29 : f32 to vector<8x1xf32>
    %122 = arith.divf %120, %121 : vector<8x1xf32>
    %123 = vector.broadcast %115 : vector<8x1xf32> to vector<8x32xf32>
    %124 = arith.subf %111, %123 : vector<8x32xf32>
    %cst_30 = arith.constant 9.99999974E-6 : f32
    %125 = vector.broadcast %cst_30 : f32 to vector<8x1xf32>
    %126 = arith.addf %122, %125 : vector<8x1xf32>
    %127 = math.rsqrt %126 : vector<8x1xf32>
    %128 = vector.broadcast %127 : vector<8x1xf32> to vector<8x32xf32>
    %129 = arith.mulf %124, %128 : vector<8x32xf32>
    %c0_31 = arith.constant 0 : index
    %c0_32 = arith.constant 0 : index
    %130 = vector.load %arg8[%c0_31, %c0_32] : memref<1x32xf32, #tpu.memory_space<vmem>>, vector<1x32xf32>
    %131 = vector.broadcast %130 : vector<1x32xf32> to vector<8x32xf32>
    %132 = arith.mulf %129, %131 : vector<8x32xf32>
    %c0_33 = arith.constant 0 : index
    %c0_34 = arith.constant 0 : index
    %133 = vector.load %arg9[%c0_33, %c0_34] : memref<1x32xf32, #tpu.memory_space<vmem>>, vector<1x32xf32>
    %134 = vector.broadcast %133 : vector<1x32xf32> to vector<8x32xf32>
    %135 = arith.addf %132, %134 : vector<8x32xf32>
    %136 = arith.truncf %135 : vector<8x32xf32> to vector<8x32xbf16>
    %c0_35 = arith.constant 0 : index
    %c0_36 = arith.constant 0 : index
    %137 = vector.load %arg10[%c0_35, %c0_36] : memref<32x128xbf16, #tpu.memory_space<vmem>>, vector<32x128xbf16>
    %cst_37 = arith.constant dense<0.000000e+00> : vector<8x128xf32>
    %138 = tpu.matmul %136, %137, %cst_37 {dimension_numbers = #tpu.dot_dimension_numbers<[1], [0], [0], [1], [0, 0, 1, 1], [], []>} : vector<8x32xbf16>, vector<32x128xbf16>, vector<8x128xf32> -> vector<8x128xf32>
    %c0_38 = arith.constant 0 : index
    %c0_39 = arith.constant 0 : index
    %139 = vector.load %arg11[%c0_38, %c0_39] : memref<1x128xf32, #tpu.memory_space<vmem>>, vector<1x128xf32>
    %140 = vector.broadcast %139 : vector<1x128xf32> to vector<8x128xf32>
    %141 = arith.addf %138, %140 : vector<8x128xf32>
    %cst_40 = arith.constant 5.000000e-01 : f32
    %142 = vector.broadcast %cst_40 : f32 to vector<8x128xf32>
    %143 = arith.mulf %142, %141 : vector<8x128xf32>
    %144 = arith.mulf %141, %141 : vector<8x128xf32>
    %145 = arith.mulf %144, %141 : vector<8x128xf32>
    %cst_41 = arith.constant 4.471500e-02 : f32
    %146 = vector.broadcast %cst_41 : f32 to vector<8x128xf32>
    %147 = arith.mulf %146, %145 : vector<8x128xf32>
    %148 = arith.addf %141, %147 : vector<8x128xf32>
    %cst_42 = arith.constant 0.797884583 : f32
    %149 = vector.broadcast %cst_42 : f32 to vector<8x128xf32>
    %150 = arith.mulf %149, %148 : vector<8x128xf32>
    %151 = math.tanh %150 : vector<8x128xf32>
    %cst_43 = arith.constant 1.000000e+00 : f32
    %152 = vector.broadcast %cst_43 : f32 to vector<8x128xf32>
    %153 = arith.addf %152, %151 : vector<8x128xf32>
    %154 = arith.mulf %143, %153 : vector<8x128xf32>
    %155 = arith.truncf %154 : vector<8x128xf32> to vector<8x128xbf16>
    %c0_44 = arith.constant 0 : index
    %c0_45 = arith.constant 0 : index
    %156 = vector.load %arg12[%c0_44, %c0_45] : memref<128x32xbf16, #tpu.memory_space<vmem>>, vector<128x32xbf16>
    %cst_46 = arith.constant dense<0.000000e+00> : vector<8x32xf32>
    %157 = tpu.matmul %155, %156, %cst_46 {dimension_numbers = #tpu.dot_dimension_numbers<[1], [0], [0], [1], [0, 0, 1, 1], [], []>} : vector<8x128xbf16>, vector<128x32xbf16>, vector<8x32xf32> -> vector<8x32xf32>
    %c0_47 = arith.constant 0 : index
    %c0_48 = arith.constant 0 : index
    %158 = vector.load %arg13[%c0_47, %c0_48] : memref<1x32xf32, #tpu.memory_space<vmem>>, vector<1x32xf32>
    %159 = vector.broadcast %158 : vector<1x32xf32> to vector<8x32xf32>
    %160 = arith.addf %157, %159 : vector<8x32xf32>
    %161 = arith.addf %160, %111 : vector<8x32xf32>
    %162 = vector.shape_cast %161 : vector<8x32xf32> to vector<1x8x32xf32>
    %c0_49 = arith.constant 0 : index
    %c0_50 = arith.constant 0 : index
    %c0_51 = arith.constant 0 : index
    %163 = vector.load %arg14[%c0_49, %c0_50, %c0_51] : memref<1x8x32xf32, #tpu.memory_space<vmem>>, vector<1x8x32xf32>
    tpu.vector_store %arg14[%c0_49, %c0_50, %c0_51], %162 {strides = array<i32>} : memref<1x8x32xf32, #tpu.memory_space<vmem>>, vector<1x8x32xf32>,
    return
  }
  func.func @transform_0(%arg0: i32) -> (i32, i32, i32) {
    %c0_i32 = arith.constant 0 : i32
    %c0_i32_0 = arith.constant 0 : i32
    %c0_i32_1 = arith.constant 0 : i32
    return %arg0, %c0_i32, %c0_i32_0 : i32, i32, i32
  }
  func.func @transform_1(%arg0: i32) -> (i32, i32) {
    %c0_i32 = arith.constant 0 : i32
    %c0_i32_0 = arith.constant 0 : i32
    %c0_i32_1 = arith.constant 0 : i32
    return %c0_i32, %c0_i32_0 : i32, i32
  }
  func.func @transform_2(%arg0: i32) -> (i32, i32) {
    %c0_i32 = arith.constant 0 : i32
    %c0_i32_0 = arith.constant 0 : i32
    %c0_i32_1 = arith.constant 0 : i32
    return %c0_i32, %c0_i32_0 : i32, i32
  }
  func.func @transform_3(%arg0: i32) -> (i32, i32) {
    %c0_i32 = arith.constant 0 : i32
    %c0_i32_0 = arith.constant 0 : i32
    %c0_i32_1 = arith.constant 0 : i32
    return %c0_i32, %c0_i32_0 : i32, i32
  }
  func.func @transform_4(%arg0: i32) -> (i32, i32) {
    %c0_i32 = arith.constant 0 : i32
    %c0_i32_0 = arith.constant 0 : i32
    %c0_i32_1 = arith.constant 0 : i32
    return %c0_i32, %c0_i32_0 : i32, i32
  }
  func.func @transform_5(%arg0: i32) -> (i32, i32) {
    %c0_i32 = arith.constant 0 : i32
    %c0_i32_0 = arith.constant 0 : i32
    %c0_i32_1 = arith.constant 0 : i32
    return %c0_i32, %c0_i32_0 : i32, i32
  }
  func.func @transform_6(%arg0: i32) -> (i32, i32) {
    %c0_i32 = arith.constant 0 : i32
    %c0_i32_0 = arith.constant 0 : i32
    %c0_i32_1 = arith.constant 0 : i32
    return %c0_i32, %c0_i32_0 : i32, i32
  }
  func.func @transform_7(%arg0: i32) -> (i32, i32) {
    %c0_i32 = arith.constant 0 : i32
    %c0_i32_0 = arith.constant 0 : i32
    %c0_i32_1 = arith.constant 0 : i32
    return %c0_i32, %c0_i32_0 : i32, i32
  }
  func.func @transform_8(%arg0: i32) -> (i32, i32) {
    %c0_i32 = arith.constant 0 : i32
    %c0_i32_0 = arith.constant 0 : i32
    %c0_i32_1 = arith.constant 0 : i32
    return %c0_i32, %c0_i32_0 : i32, i32
  }
  func.func @transform_9(%arg0: i32) -> (i32, i32) {
    %c0_i32 = arith.constant 0 : i32
    %c0_i32_0 = arith.constant 0 : i32
    %c0_i32_1 = arith.constant 0 : i32
    return %c0_i32, %c0_i32_0 : i32, i32
  }
  func.func @transform_10(%arg0: i32) -> (i32, i32) {
    %c0_i32 = arith.constant 0 : i32
    %c0_i32_0 = arith.constant 0 : i32
    %c0_i32_1 = arith.constant 0 : i32
    return %c0_i32, %c0_i32_0 : i32, i32
  }
  func.func @transform_11(%arg0: i32) -> (i32, i32) {
    %c0_i32 = arith.constant 0 : i32
    %c0_i32_0 = arith.constant 0 : i32
    %c0_i32_1 = arith.constant 0 : i32
    return %c0_i32, %c0_i32_0 : i32, i32
  }
  func.func @transform_12(%arg0: i32) -> (i32, i32) {
    %c0_i32 = arith.constant 0 : i32
    %c0_i32_0 = arith.constant 0 : i32
    %c0_i32_1 = arith.constant 0 : i32
    return %c0_i32, %c0_i32_0 : i32, i32
  }
  func.func @transform_13(%arg0: i32) -> (i32, i32, i32) {
    %c0_i32 = arith.constant 0 : i32
    %c0_i32_0 = arith.constant 0 : i32
    %c0_i32_1 = arith.constant 0 : i32
    return %arg0, %c0_i32, %c0_i32_0 : i32, i32, i32
  }
}

</mosaic_0001>

<llo_original>
// kernel: fn.1
$region0: #{fn.1}
  #allocation0 [shape = 'u32[]', space=smem, size = 0x4, offset = 0x4, fixed_abs, tag = 'smem constant byte address 0x4 - core index']
  #allocation1 [shape = 'u32[72,128]{1,0:T(1,128)}', space=vmem, size = 0x9000, scoped, tag = 'internal scratch']
  %s0 = inlined_call_operand.vmem [shape: f32[2,8,32], index: 0, kind: input, shape index: {}]
  %s1 = inlined_call_operand.vmem [shape: f32[1,32], index: 1, kind: input, shape index: {}]
  %s2 = inlined_call_operand.vmem [shape: f32[1,32], index: 2, kind: input, shape index: {}]
  %s3 = inlined_call_operand.vmem [shape: bf16[32,96], index: 3, kind: input, shape index: {}]
  %s4 = inlined_call_operand.vmem [shape: f32[1,96], index: 4, kind: input, shape index: {}]
  %s5 = inlined_call_operand.vmem [shape: bf16[32,32], index: 5, kind: input, shape index: {}]
  %s6 = inlined_call_operand.vmem [shape: f32[1,32], index: 6, kind: input, shape index: {}]
  %s7 = inlined_call_operand.vmem [shape: f32[1,32], index: 7, kind: input, shape index: {}]
  %s8 = inlined_call_operand.vmem [shape: f32[1,32], index: 8, kind: input, shape index: {}]
  %s9 = inlined_call_operand.vmem [shape: bf16[32,128], index: 9, kind: input, shape index: {}]
  %s10 = inlined_call_operand.vmem [shape: f32[1,128], index: 10, kind: input, shape index: {}]
  %s11 = inlined_call_operand.vmem [shape: bf16[128,32], index: 11, kind: input, shape index: {}]
  %s12 = inlined_call_operand.vmem [shape: f32[1,32], index: 12, kind: input, shape index: {}]
  %s13 = inlined_call_operand.hbm [shape: f32[2,8,32], index: 13, kind: output, shape index: {}]
  %s14 = sld [smem:[#allocation0]]
  $region85: #{fn.1} parent=0
    _
  %s16 = ssub.s32 1, %s14
  %s17 = scalar_select 0, %s16, %s14
  $region1: #{fn.1} parent=0
    #allocation2 [shape = 'u8[8192]{0}', space=vmem, size = 0x2000, scoped, tag = 'output window, operand 0']
    #allocation3 [shape = 's32[2]{0}', space=sflag, size = 0x8, scoped, tag = 'scoped memory for fn.1']
    %18 = vsyncpa [#allocation3], 0
    %s19 = scalar_lea.sflag [#allocation3], 1
    %20 = vsyncpa %s19, 0
    loop: start=0, step=1, limit=4
    $region2: #{fn.1} parent=1 // loop_pre_header
      _
    $region3: #{fn.1} parent=1 // loop_header
      %s22 = sphi 0, %s26
      %p23 = scmp.ge.s32.totalorder %s22, 4
      %s32 = sphi 0, %s34
      %s35 = sphi 0, %s32
      %s36 = sphi 0, %s35
      %s52 = sphi 0, %s36
      %s56 = sphi 0, %s56
      %s58 = sphi 0, %s56
      %s59 = sphi 0, %s58
      %s73 = sphi 0, %s59
      %s77 = sphi 0, %s77
      %s79 = sphi 0, %s77
      %s80 = sphi 0, %s79
      %s94 = sphi 0, %s80
      %s98 = sphi 0, %s98
      %s100 = sphi 0, %s98
      %s101 = sphi 0, %s100
      %s115 = sphi 0, %s101
      %s119 = sphi 0, %s119
      %s121 = sphi 0, %s119
      %s122 = sphi 0, %s121
      %s136 = sphi 0, %s122
      %s140 = sphi 0, %s140
      %s142 = sphi 0, %s140
      %s143 = sphi 0, %s142
      %s157 = sphi 0, %s143
      %s161 = sphi 0, %s161
      %s163 = sphi 0, %s161
      %s164 = sphi 0, %s163
      %s178 = sphi 0, %s164
      %s182 = sphi 0, %s182
      %s184 = sphi 0, %s182
      %s185 = sphi 0, %s184
      %s199 = sphi 0, %s185
      %s203 = sphi 0, %s203
      %s205 = sphi 0, %s203
      %s206 = sphi 0, %s205
      %s220 = sphi 0, %s206
      %s224 = sphi 0, %s224
      %s226 = sphi 0, %s224
      %s227 = sphi 0, %s226
      %s241 = sphi 0, %s227
      %s245 = sphi 0, %s245
      %s247 = sphi 0, %s245
      %s248 = sphi 0, %s247
      %s262 = sphi 0, %s248
      %s266 = sphi 0, %s266
      %s268 = sphi 0, %s266
      %s269 = sphi 0, %s268
      %s283 = sphi 0, %s269
      %s287 = sphi 0, %s287
      %s289 = sphi 0, %s287
      %s290 = sphi 0, %s289
      %s304 = sphi 0, %s290
      %s310 = sphi 0, %s312
      %s313 = sphi 0, %s310
      %s314 = sphi 0, %s313
      %s330 = sphi 0, %s314
    $region4: #{fn.1} parent=1 // loop_header_branch
      %25 = sbr.rel (%p23) target = $region8
    $region5: #{fn.1} parent=1 // loop_body
      %s27 = ssub.s32 %s22, 1
      %s28 = ssub.s32 %s22, 2
      %s29 = sadd.s32 %s22, 1
      %s30 = ssub.s32 %s22, %s29
      %p31 = scmp.eq.s32.totalorder %s30, 0
      %s33 = sadd.s32 %s32, 1
      %s34 = scalar_select %p31, %s32, %s33
      %p37 = pneg %p31
      %p38 = scmp.eq.s32.totalorder %s22, 1
      %p39 = por %p37, %p38
      %p40 = scmp.ne.s32.totalorder %s32, %s35
      %p41 = scmp.eq.s32.totalorder %s22, 0
      %p42 = por %p40, %p41
      %p43 = scmp.ne.s32.totalorder %s32, %s35
      %p44 = scmp.eq.s32.totalorder %s27, 1
      %p45 = por %p43, %p44
      %p46 = scmp.ne.s32.totalorder %s35, %s36
      %p47 = scmp.eq.s32.totalorder %s27, 0
      %p48 = por %p46, %p47
      %p49 = scmp.ne.s32.totalorder %s35, %s36
      %p50 = scmp.eq.s32.totalorder %s28, 1
      %p51 = por %p49, %p50
      %p53 = scmp.ne.s32.totalorder %s36, %s52
      %p54 = scmp.eq.s32.totalorder %s28, 0
      %p55 = por %p53, %p54
      %s57 = sadd.s32 %s56, 1
      %p60 = scmp.eq.s32.totalorder %s22, 1
      %p61 = scmp.ne.s32.totalorder %s56, %s58
      %p62 = scmp.eq.s32.totalorder %s22, 0
      %p63 = por %p61, %p62
      %p64 = scmp.ne.s32.totalorder %s56, %s58
      %p65 = scmp.eq.s32.totalorder %s27, 1
      %p66 = por %p64, %p65
      %p67 = scmp.ne.s32.totalorder %s58, %s59
      %p68 = scmp.eq.s32.totalorder %s27, 0
      %p69 = por %p67, %p68
      %p70 = scmp.ne.s32.totalorder %s58, %s59
      %p71 = scmp.eq.s32.totalorder %s28, 1
      %p72 = por %p70, %p71
      %p74 = scmp.ne.s32.totalorder %s59, %s73
      %p75 = scmp.eq.s32.totalorder %s28, 0
      %p76 = por %p74, %p75
      %s78 = sadd.s32 %s77, 1
      %p81 = scmp.eq.s32.totalorder %s22, 1
      %p82 = scmp.ne.s32.totalorder %s77, %s79
      %p83 = scmp.eq.s32.totalorder %s22, 0
      %p84 = por %p82, %p83
      %p85 = scmp.ne.s32.totalorder %s77, %s79
      %p86 = scmp.eq.s32.totalorder %s27, 1
      %p87 = por %p85, %p86
      %p88 = scmp.ne.s32.totalorder %s79, %s80
      %p89 = scmp.eq.s32.totalorder %s27, 0
      %p90 = por %p88, %p89
      %p91 = scmp.ne.s32.totalorder %s79, %s80
      %p92 = scmp.eq.s32.totalorder %s28, 1
      %p93 = por %p91, %p92
      %p95 = scmp.ne.s32.totalorder %s80, %s94
      %p96 = scmp.eq.s32.totalorder %s28, 0
      %p97 = por %p95, %p96
      %s99 = sadd.s32 %s98, 1
      %p102 = scmp.eq.s32.totalorder %s22, 1
      %p103 = scmp.ne.s32.totalorder %s98, %s100
      %p104 = scmp.eq.s32.totalorder %s22, 0
      %p105 = por %p103, %p104
      %p106 = scmp.ne.s32.totalorder %s98, %s100
      %p107 = scmp.eq.s32.totalorder %s27, 1
      %p108 = por %p106, %p107
      %p109 = scmp.ne.s32.totalorder %s100, %s101
      %p110 = scmp.eq.s32.totalorder %s27, 0
      %p111 = por %p109, %p110
      %p112 = scmp.ne.s32.totalorder %s100, %s101
      %p113 = scmp.eq.s32.totalorder %s28, 1
      %p114 = por %p112, %p113
      %p116 = scmp.ne.s32.totalorder %s101, %s115
      %p117 = scmp.eq.s32.totalorder %s28, 0
      %p118 = por %p116, %p117
      %s120 = sadd.s32 %s119, 1
      %p123 = scmp.eq.s32.totalorder %s22, 1
      %p124 = scmp.ne.s32.totalorder %s119, %s121
      %p125 = scmp.eq.s32.totalorder %s22, 0
      %p126 = por %p124, %p125
      %p127 = scmp.ne.s32.totalorder %s119, %s121
      %p128 = scmp.eq.s32.totalorder %s27, 1
      %p129 = por %p127, %p128
      %p130 = scmp.ne.s32.totalorder %s121, %s122
      %p131 = scmp.eq.s32.totalorder %s27, 0
      %p132 = por %p130, %p131
      %p133 = scmp.ne.s32.totalorder %s121, %s122
      %p134 = scmp.eq.s32.totalorder %s28, 1
      %p135 = por %p133, %p134
      %p137 = scmp.ne.s32.totalorder %s122, %s136
      %p138 = scmp.eq.s32.totalorder %s28, 0
      %p139 = por %p137, %p138
      %s141 = sadd.s32 %s140, 1
      %p144 = scmp.eq.s32.totalorder %s22, 1
      %p145 = scmp.ne.s32.totalorder %s140, %s142
      %p146 = scmp.eq.s32.totalorder %s22, 0
      %p147 = por %p145, %p146
      %p148 = scmp.ne.s32.totalorder %s140, %s142
      %p149 = scmp.eq.s32.totalorder %s27, 1
      %p150 = por %p148, %p149
      %p151 = scmp.ne.s32.totalorder %s142, %s143
      %p152 = scmp.eq.s32.totalorder %s27, 0
      %p153 = por %p151, %p152
      %p154 = scmp.ne.s32.totalorder %s142, %s143
      %p155 = scmp.eq.s32.totalorder %s28, 1
      %p156 = por %p154, %p155
      %p158 = scmp.ne.s32.totalorder %s143, %s157
      %p159 = scmp.eq.s32.totalorder %s28, 0
      %p160 = por %p158, %p159
      %s162 = sadd.s32 %s161, 1
      %p165 = scmp.eq.s32.totalorder %s22, 1
      %p166 = scmp.ne.s32.totalorder %s161, %s163
      %p167 = scmp.eq.s32.totalorder %s22, 0
      %p168 = por %p166, %p167
      %p169 = scmp.ne.s32.totalorder %s161, %s163
      %p170 = scmp.eq.s32.totalorder %s27, 1
      %p171 = por %p169, %p170
      %p172 = scmp.ne.s32.totalorder %s163, %s164
      %p173 = scmp.eq.s32.totalorder %s27, 0
      %p174 = por %p172, %p173
      %p175 = scmp.ne.s32.totalorder %s163, %s164
      %p176 = scmp.eq.s32.totalorder %s28, 1
      %p177 = por %p175, %p176
      %p179 = scmp.ne.s32.totalorder %s164, %s178
      %p180 = scmp.eq.s32.totalorder %s28, 0
      %p181 = por %p179, %p180
      %s183 = sadd.s32 %s182, 1
      %p186 = scmp.eq.s32.totalorder %s22, 1
      %p187 = scmp.ne.s32.totalorder %s182, %s184
      %p188 = scmp.eq.s32.totalorder %s22, 0
      %p189 = por %p187, %p188
      %p190 = scmp.ne.s32.totalorder %s182, %s184
      %p191 = scmp.eq.s32.totalorder %s27, 1
      %p192 = por %p190, %p191
      %p193 = scmp.ne.s32.totalorder %s184, %s185
      %p194 = scmp.eq.s32.totalorder %s27, 0
      %p195 = por %p193, %p194
      %p196 = scmp.ne.s32.totalorder %s184, %s185
      %p197 = scmp.eq.s32.totalorder %s28, 1
      %p198 = por %p196, %p197
      %p200 = scmp.ne.s32.totalorder %s185, %s199
      %p201 = scmp.eq.s32.totalorder %s28, 0
      %p202 = por %p200, %p201
      %s204 = sadd.s32 %s203, 1
      %p207 = scmp.eq.s32.totalorder %s22, 1
      %p208 = scmp.ne.s32.totalorder %s203, %s205
      %p209 = scmp.eq.s32.totalorder %s22, 0
      %p210 = por %p208, %p209
      %p211 = scmp.ne.s32.totalorder %s203, %s205
      %p212 = scmp.eq.s32.totalorder %s27, 1
      %p213 = por %p211, %p212
      %p214 = scmp.ne.s32.totalorder %s205, %s206
      %p215 = scmp.eq.s32.totalorder %s27, 0
      %p216 = por %p214, %p215
      %p217 = scmp.ne.s32.totalorder %s205, %s206
      %p218 = scmp.eq.s32.totalorder %s28, 1
      %p219 = por %p217, %p218
      %p221 = scmp.ne.s32.totalorder %s206, %s220
      %p222 = scmp.eq.s32.totalorder %s28, 0
      %p223 = por %p221, %p222
      %s225 = sadd.s32 %s224, 1
      %p228 = scmp.eq.s32.totalorder %s22, 1
      %p229 = scmp.ne.s32.totalorder %s224, %s226
      %p230 = scmp.eq.s32.totalorder %s22, 0
      %p231 = por %p229, %p230
      %p232 = scmp.ne.s32.totalorder %s224, %s226
      %p233 = scmp.eq.s32.totalorder %s27, 1
      %p234 = por %p232, %p233
      %p235 = scmp.ne.s32.totalorder %s226, %s227
      %p236 = scmp.eq.s32.totalorder %s27, 0
      %p237 = por %p235, %p236
      %p238 = scmp.ne.s32.totalorder %s226, %s227
      %p239 = scmp.eq.s32.totalorder %s28, 1
      %p240 = por %p238, %p239
      %p242 = scmp.ne.s32.totalorder %s227, %s241
      %p243 = scmp.eq.s32.totalorder %s28, 0
      %p244 = por %p242, %p243
      %s246 = sadd.s32 %s245, 1
      %p249 = scmp.eq.s32.totalorder %s22, 1
      %p250 = scmp.ne.s32.totalorder %s245, %s247
      %p251 = scmp.eq.s32.totalorder %s22, 0
      %p252 = por %p250, %p251
      %p253 = scmp.ne.s32.totalorder %s245, %s247
      %p254 = scmp.eq.s32.totalorder %s27, 1
      %p255 = por %p253, %p254
      %p256 = scmp.ne.s32.totalorder %s247, %s248
      %p257 = scmp.eq.s32.totalorder %s27, 0
      %p258 = por %p256, %p257
      %p259 = scmp.ne.s32.totalorder %s247, %s248
      %p260 = scmp.eq.s32.totalorder %s28, 1
      %p261 = por %p259, %p260
      %p263 = scmp.ne.s32.totalorder %s248, %s262
      %p264 = scmp.eq.s32.totalorder %s28, 0
      %p265 = por %p263, %p264
      %s267 = sadd.s32 %s266, 1
      %p270 = scmp.eq.s32.totalorder %s22, 1
      %p271 = scmp.ne.s32.totalorder %s266, %s268
      %p272 = scmp.eq.s32.totalorder %s22, 0
      %p273 = por %p271, %p272
      %p274 = scmp.ne.s32.totalorder %s266, %s268
      %p275 = scmp.eq.s32.totalorder %s27, 1
      %p276 = por %p274, %p275
      %p277 = scmp.ne.s32.totalorder %s268, %s269
      %p278 = scmp.eq.s32.totalorder %s27, 0
      %p279 = por %p277, %p278
      %p280 = scmp.ne.s32.totalorder %s268, %s269
      %p281 = scmp.eq.s32.totalorder %s28, 1
      %p282 = por %p280, %p281
      %p284 = scmp.ne.s32.totalorder %s269, %s283
      %p285 = scmp.eq.s32.totalorder %s28, 0
      %p286 = por %p284, %p285
      %s288 = sadd.s32 %s287, 1
      %p291 = scmp.eq.s32.totalorder %s22, 1
      %p292 = scmp.ne.s32.totalorder %s287, %s289
      %p293 = scmp.eq.s32.totalorder %s22, 0
      %p294 = por %p292, %p293
      %p295 = scmp.ne.s32.totalorder %s287, %s289
      %p296 = scmp.eq.s32.totalorder %s27, 1
      %p297 = por %p295, %p296
      %p298 = scmp.ne.s32.totalorder %s289, %s290
      %p299 = scmp.eq.s32.totalorder %s27, 0
      %p300 = por %p298, %p299
      %p301 = scmp.ne.s32.totalorder %s289, %s290
      %p302 = scmp.eq.s32.totalorder %s28, 1
      %p303 = por %p301, %p302
      %p305 = scmp.ne.s32.totalorder %s290, %s304
      %p306 = scmp.eq.s32.totalorder %s28, 0
      %p307 = por %p305, %p306
      %s308 = ssub.s32 %s22, %s29
      %p309 = scmp.eq.s32.totalorder %s308, 0
      %s311 = sadd.s32 %s310, 1
      %s312 = scalar_select %p309, %s310, %s311
      %p315 = pneg %p309
      %p316 = scmp.eq.s32.totalorder %s22, 1
      %p317 = por %p315, %p316
      %p318 = scmp.ne.s32.totalorder %s310, %s313
      %p319 = scmp.eq.s32.totalorder %s22, 0
      %p320 = por %p318, %p319
      %p321 = scmp.ne.s32.totalorder %s310, %s313
      %p322 = scmp.eq.s32.totalorder %s27, 1
      %p323 = por %p321, %p322
      %p324 = scmp.ne.s32.totalorder %s313, %s314
      %p325 = scmp.eq.s32.totalorder %s27, 0
      %p326 = por %p324, %p325
      %p327 = scmp.ne.s32.totalorder %s313, %s314
      %p328 = scmp.eq.s32.totalorder %s28, 1
      %p329 = por %p327, %p328
      %p331 = scmp.ne.s32.totalorder %s314, %s330
      %p332 = scmp.eq.s32.totalorder %s28, 0
      %p333 = por %p331, %p332
      %p334 = scmp.le.s32.totalorder 1, %s22
      %p335 = scmp.lt.s32.totalorder %s22, 3
      %p336 = pnand %p334, %p335
      %p337 = pneg %p336
      // Predicated region
      $region9: #{fn.1} parent=5 // pred_check
        _
      $region10: #{fn.1} parent=5 // pred_check_branch
        %339 = sbr.rel (%p336) target = $region12
      $region11: #{fn.1} parent=5 // pred_region
        %s340 = ssub.s32 %s22, 1
        // Predicated region
        $region13: #{fn.1} parent=11 // pred_check
          %p341 = pneg %p69
        $region14: #{fn.1} parent=11 // pred_check_branch
          %343 = sbr.rel (%p341) target = $region16
        $region15: #{fn.1} parent=11 // pred_region
          _
        $region16: #{fn.1} parent=11 // pred_fallthru
          _
        // Predicated region
        $region17: #{fn.1} parent=11 // pred_check
          %p344 = pneg %p90
        $region18: #{fn.1} parent=11 // pred_check_branch
          %346 = sbr.rel (%p344) target = $region20
        $region19: #{fn.1} parent=11 // pred_region
          _
        $region20: #{fn.1} parent=11 // pred_fallthru
          _
        // Predicated region
        $region21: #{fn.1} parent=11 // pred_check
          %p347 = pneg %p111
        $region22: #{fn.1} parent=11 // pred_check_branch
          %349 = sbr.rel (%p347) target = $region24
        $region23: #{fn.1} parent=11 // pred_region
          _
        $region24: #{fn.1} parent=11 // pred_fallthru
          _
        // Predicated region
        $region25: #{fn.1} parent=11 // pred_check
          %p350 = pneg %p132
        $region26: #{fn.1} parent=11 // pred_check_branch
          %352 = sbr.rel (%p350) target = $region28
        $region27: #{fn.1} parent=11 // pred_region
          _
        $region28: #{fn.1} parent=11 // pred_fallthru
          _
        // Predicated region
        $region29: #{fn.1} parent=11 // pred_check
          %p353 = pneg %p153
        $region30: #{fn.1} parent=11 // pred_check_branch
          %355 = sbr.rel (%p353) target = $region32
        $region31: #{fn.1} parent=11 // pred_region
          _
        $region32: #{fn.1} parent=11 // pred_fallthru
          _
        // Predicated region
        $region33: #{fn.1} parent=11 // pred_check
          %p356 = pneg %p174
        $region34: #{fn.1} parent=11 // pred_check_branch
          %358 = sbr.rel (%p356) target = $region36
        $region35: #{fn.1} parent=11 // pred_region
          _
        $region36: #{fn.1} parent=11 // pred_fallthru
          _
        // Predicated region
        $region37: #{fn.1} parent=11 // pred_check
          %p359 = pneg %p195
        $region38: #{fn.1} parent=11 // pred_check_branch
          %361 = sbr.rel (%p359) target = $region40
        $region39: #{fn.1} parent=11 // pred_region
          _
        $region40: #{fn.1} parent=11 // pred_fallthru
          _
        // Predicated region
        $region41: #{fn.1} parent=11 // pred_check
          %p362 = pneg %p216
        $region42: #{fn.1} parent=11 // pred_check_branch
          %364 = sbr.rel (%p362) target = $region44
        $region43: #{fn.1} parent=11 // pred_region
          _
        $region44: #{fn.1} parent=11 // pred_fallthru
          _
        // Predicated region
        $region45: #{fn.1} parent=11 // pred_check
          %p365 = pneg %p237
        $region46: #{fn.1} parent=11 // pred_check_branch
          %367 = sbr.rel (%p365) target = $region48
        $region47: #{fn.1} parent=11 // pred_region
          _
        $region48: #{fn.1} parent=11 // pred_fallthru
          _
        // Predicated region
        $region49: #{fn.1} parent=11 // pred_check
          %p368 = pneg %p258
        $region50: #{fn.1} parent=11 // pred_check_branch
          %370 = sbr.rel (%p368) target = $region52
        $region51: #{fn.1} parent=11 // pred_region
          _
        $region52: #{fn.1} parent=11 // pred_fallthru
          _
        // Predicated region
        $region53: #{fn.1} parent=11 // pred_check
          %p371 = pneg %p279
        $region54: #{fn.1} parent=11 // pred_check_branch
          %373 = sbr.rel (%p371) target = $region56
        $region55: #{fn.1} parent=11 // pred_region
          _
        $region56: #{fn.1} parent=11 // pred_fallthru
          _
        // Predicated region
        $region57: #{fn.1} parent=11 // pred_check
          %p374 = pneg %p300
        $region58: #{fn.1} parent=11 // pred_check_branch
          %376 = sbr.rel (%p374) target = $region60
        $region59: #{fn.1} parent=11 // pred_region
          _
        $region60: #{fn.1} parent=11 // pred_fallthru
          _
      $region12: #{fn.1} parent=5 // pred_fallthru
        _
      %p377 = scmp.lt.s32.totalorder %s22, 2
      // Predicated region
      $region61: #{fn.1} parent=5 // pred_check
        %p378 = pneg %p377
      $region62: #{fn.1} parent=5 // pred_check_branch
        %380 = sbr.rel (%p378) target = $region64
      $region63: #{fn.1} parent=5 // pred_region
        // Predicated region
        $region65: #{fn.1} parent=63 // pred_check
          %p381 = pneg %p42
        $region66: #{fn.1} parent=63 // pred_check_branch
          %383 = sbr.rel (%p381) target = $region68
        $region67: #{fn.1} parent=63 // pred_region
          %p384 = scmp.lt.s32.totalorder %s22, 1
          %s385 = scalar_select %p384, %s22, 1
          %s386 = smul.addr %s385, 8
          %s387 = scalar_lea.vmem %s0, %s386
        $region68: #{fn.1} parent=63 // pred_fallthru
          _
      $region64: #{fn.1} parent=5 // pred_fallthru
        _
      %p388 = scmp.le.s32.totalorder 1, %s22
      %p389 = scmp.lt.s32.totalorder %s22, 3
      %p390 = pnand %p388, %p389
      %p391 = pneg %p390
      // Predicated region
      $region69: #{fn.1} parent=5 // pred_check
        _
      $region70: #{fn.1} parent=5 // pred_check_branch
        %393 = sbr.rel (%p390) target = $region72
      $region71: #{fn.1} parent=5 // pred_region
        %s394 = ssub.s32 %s22, 1
        %p395 = scmp.lt.s32.totalorder %s27, 1
        %s396 = scalar_select %p395, %s27, 1
        %s397 = smul.addr %s396, 8
        %s398 = scalar_lea.vmem %s0, %s397
        %p399 = pneg %p48
        %p400 = pneg %p45
        %p401 = pneg %p69
        %p402 = pneg %p66
        %p403 = pneg %p90
        %p404 = pneg %p87
        %p405 = pneg %p111
        %p406 = pneg %p108
        %p407 = pneg %p132
        %p408 = pneg %p129
        %p409 = pneg %p153
        %p410 = pneg %p150
        %p411 = pneg %p174
        %p412 = pneg %p171
        %p413 = pneg %p195
        %p414 = pneg %p192
        %p415 = pneg %p216
        %p416 = pneg %p213
        %p417 = pneg %p237
        %p418 = pneg %p234
        %p419 = pneg %p258
        %p420 = pneg %p255
        %p421 = pneg %p279
        %p422 = pneg %p276
        %p423 = pneg %p300
        %p424 = pneg %p297
        %p425 = pneg %p326
        %p426 = pneg %p323
        %s427 = sand.u32 %s313, 1
        %s428 = scalar_lea.sflag [#allocation3], %s427
        %s429 = sand.u32 %s313, 1
        %s430 = smul.addr %s429, 8
        %s431 = scalar_lea.vmem [#allocation2], %s430
        %p432 = scmp.lt.s32.totalorder %s27, 1
        %s433 = scalar_select %p432, %s27, 1
        %s434 = smul.addr %s433, 8
        %s435 = scalar_lea.vmem %s0, %s434
        %v437 = vld [vmem:[%s435] sm:$0xff]
        %vm438 = vcmask 261120
        %v439 = vsel %vm438, %v437, 0.0
        %440 = vadd.xlane.f32.xlu0 %v439
        %v441 = vpop.xlane.xlu0 %440
        %v442 = vrcp.pop 32.0
        %v443 = vmul.f32 32.0, %v442
        %v444 = vsub.f32 1.0, %v443
        %v445 = vmul.f32 %v442, %v444
        %v446 = vadd.f32 %v442, %v445
        %vm447 = vweird.f32 %v442
        %v448 = vsel %vm447, %v442, %v446
        %v449 = vmul.f32 %v441, %v448
        %v450 = vsub.f32 %v437, %v449
        %v451 = vmul.f32 %v450, %v450
        %v452 = vsel %vm438, %v451, 0.0
        %453 = vadd.xlane.f32.xlu0 %v452
        %v454 = vpop.xlane.xlu0 %453
        %v455 = vmul.f32 %v454, %v448
        %v456 = vadd.f32 %v455, 1e-05
        %v457 = vrsqrt.pop %v456
        %v458 = vmul.f32 %v457, %v456
        %v459 = vmul.f32 %v458, %v457
        %v460 = vmul.f32 0.5, %v459
        %v461 = vsub.f32 1.5, %v460
        %v462 = vmul.f32 %v457, %v461
        %vm463 = vweird.f32 %v456
        %vm464 = vweird.f32 %v457
        %vm465 = vmor %vm463, %vm464
        %v466 = vsel %vm465, %v457, %v462
        %v467 = vmul.f32 %v450, %v466
        %v468 = vld [vmem:[%s1] sm:$0x1]
        %v470 = vperm.slane %v468, 0
        %v472 = vmul.f32 %v467, %v470
        %v473 = vld [vmem:[%s2] sm:$0x1]
        %v475 = vperm.slane %v473, 0
        %v477 = vadd.f32 %v472, %v475
        %v478 = vpack.c.bf16 %v477, %v477
        %v479 = vld [vmem:[%s3] sm:$0xf]
        %v480 = vld [vmem:[%s3 + $0x4] sm:$0xf]
        %v481 = vld [vmem:[%s3 + $0x8] sm:$0xf]
        %v482 = vld [vmem:[%s3 + $0xc] sm:$0xf]
        %v483 = vld [vmem:[%s4] sm:$0x1]
        %v485 = vperm.slane %v483, 0
        %v491 = vunpack.c.l.b16 %v479
        %v492 = vunpack.c.l.b16 %v480
        %v493 = vunpack.c.l.b16 %v481
        %v494 = vunpack.c.l.b16 %v482
        %v495 = vpack.c.b16 %v492, %v491
        %v496 = vpack.c.b16 %v494, %v493
        %v500 = vsel %vm438, %v478, 0
        %502 = vmatpush.bf16.msra.mxu0 0
        %503 = vmatpush.bf16.msra.mxu0 0
        %504 = vmatpush.bf16.msra.mxu0 0
        %505 = vmatpush.bf16.msra.mxu0 0
        %506 = vmatpush.bf16.msra.mxu0 0
        %507 = vmatpush.bf16.msra.mxu0 0
        %508 = vmatpush.bf16.msra.mxu0 %v496
        %509 = vmatpush.bf16.msra.mxu0 %v495
        %510 = vmatmul.bf16.gmra.mxu0 %v500
        %v511 = vpop.f32.mrf.mxu0
        %v512 = vadd.f32 %v485, %v511
        %v513 = vpop.f32.mrf.mxu0
        %514 = vdwg.mxu0
        %v515 = vmul.f32 %v512, 0.35355338
        %517 = vrot.lane.b32.xlu0 %v515, 120
        %v518 = vpop.permute.xlu0 %517
        %520 = vrot.lane.b32.xlu0 %v515, 112
        %v521 = vpop.permute.xlu0 %520
        %523 = vrot.lane.b32.xlu0 %v515, 104
        %v524 = vpop.permute.xlu0 %523
        %v526 = vpack.c.bf16 %v515, %v515
        %v527 = vpack.c.bf16 %v518, %v518
        %v528 = vpack.c.bf16 %v521, %v521
        %v529 = vpack.c.bf16 %v524, %v524
        %531 = vrot.lane.b32.xlu0 %v512, 120
        %v532 = vpop.permute.xlu0 %531
        %534 = vrot.lane.b32.xlu0 %v512, 112
        %v535 = vpop.permute.xlu0 %534
        %537 = vrot.lane.b32.xlu0 %v512, 104
        %v538 = vpop.permute.xlu0 %537
        %v540 = vpack.c.bf16 %v512, %v512
        %v541 = vpack.c.bf16 %v532, %v532
        %v542 = vpack.c.bf16 %v535, %v535
        %v543 = vpack.c.bf16 %v538, %v538
        %v545 = vunpack.c.l.b16 %v540
        %v546 = vpack.c.b16 %v545, %v545
        %547 = vrot.lane.b32.xlu0 %v546, 96
        %v548 = vpop.permute.xlu0 %547
        %vm549 = vcmask 64512
        %v551 = vsel %vm549, %v526, 0
        %v554 = vsel %vm549, %v548, 0
        %556 = vmatpush.bf16.xpose.msra.mxu0 0
        %557 = vmatpush.bf16.xpose.msra.mxu0 0
        %558 = vmatpush.bf16.xpose.msra.mxu0 0
        %559 = vmatpush.bf16.xpose.msra.mxu0 0
        %560 = vmatpush.bf16.xpose.msra.mxu0 0
        %561 = vmatpush.bf16.xpose.msra.mxu0 0
        %562 = vmatpush.bf16.xpose.msra.mxu0 0
        %563 = vmatpush.bf16.xpose.msra.mxu0 %v554
        %564 = vmatmul.bf16.gmra.mxu0 %v551
        %v565 = vpop.f32.mrf.mxu0
        %v566 = vadd.f32 0.0, %v565
        %v567 = vpop.f32.mrf.mxu0
        %568 = vdwg.mxu0
        %v570 = vunpack.c.l.b16 %v541
        %v571 = vpack.c.b16 %v570, %v570
        %572 = vrot.lane.b32.xlu0 %v571, 96
        %v573 = vpop.permute.xlu0 %572
        %v575 = vsel %vm549, %v527, 0
        %v578 = vsel %vm549, %v573, 0
        %580 = vmatpush.bf16.xpose.msra.mxu0 0
        %581 = vmatpush.bf16.xpose.msra.mxu0 0
        %582 = vmatpush.bf16.xpose.msra.mxu0 0
        %583 = vmatpush.bf16.xpose.msra.mxu0 0
        %584 = vmatpush.bf16.xpose.msra.mxu0 0
        %585 = vmatpush.bf16.xpose.msra.mxu0 0
        %586 = vmatpush.bf16.xpose.msra.mxu0 0
        %587 = vmatpush.bf16.xpose.msra.mxu0 %v578
        %588 = vmatmul.bf16.gmra.mxu0 %v575
        %v589 = vpop.f32.mrf.mxu0
        %v590 = vadd.f32 0.0, %v589
        %v591 = vpop.f32.mrf.mxu0
        %592 = vdwg.mxu0
        %v594 = vunpack.c.l.b16 %v542
        %v595 = vpack.c.b16 %v594, %v594
        %596 = vrot.lane.b32.xlu0 %v595, 96
        %v597 = vpop.permute.xlu0 %596
        %v599 = vsel %vm549, %v528, 0
        %v602 = vsel %vm549, %v597, 0
        %604 = vmatpush.bf16.xpose.msra.mxu0 0
        %605 = vmatpush.bf16.xpose.msra.mxu0 0
        %606 = vmatpush.bf16.xpose.msra.mxu0 0
        %607 = vmatpush.bf16.xpose.msra.mxu0 0
        %608 = vmatpush.bf16.xpose.msra.mxu0 0
        %609 = vmatpush.bf16.xpose.msra.mxu0 0
        %610 = vmatpush.bf16.xpose.msra.mxu0 0
        %611 = vmatpush.bf16.xpose.msra.mxu0 %v602
        %612 = vmatmul.bf16.gmra.mxu0 %v599
        %v613 = vpop.f32.mrf.mxu0
        %v614 = vadd.f32 0.0, %v613
        %v615 = vpop.f32.mrf.mxu0
        %616 = vdwg.mxu0
        %v618 = vunpack.c.l.b16 %v543
        %v619 = vpack.c.b16 %v618, %v618
        %620 = vrot.lane.b32.xlu0 %v619, 96
        %v621 = vpop.permute.xlu0 %620
        %v623 = vsel %vm549, %v529, 0
        %v626 = vsel %vm549, %v621, 0
        %628 = vmatpush.bf16.xpose.msra.mxu0 0
        %629 = vmatpush.bf16.xpose.msra.mxu0 0
        %630 = vmatpush.bf16.xpose.msra.mxu0 0
        %631 = vmatpush.bf16.xpose.msra.mxu0 0
        %632 = vmatpush.bf16.xpose.msra.mxu0 0
        %633 = vmatpush.bf16.xpose.msra.mxu0 0
        %634 = vmatpush.bf16.xpose.msra.mxu0 0
        %635 = vmatpush.bf16.xpose.msra.mxu0 %v626
        %636 = vmatmul.bf16.gmra.mxu0 %v623
        %v637 = vpop.f32.mrf.mxu0
        %v638 = vadd.f32 0.0, %v637
        %v639 = vpop.f32.mrf.mxu0
        %640 = vdwg.mxu0
        %v641 = vlaneseq
        %v642 = vshrl.u32 %v641, 7
        %v643 = vlaneseq
        %v644 = vand.u32 %v643, 127
        %vm645 = vcmp.gt.s32.totalorder %v644, %v642
        %v646 = vsel %vm645, 1, 0
        %vm647 = vcmp.eq.s32.totalorder %v646, 1
        %v648 = vsel %vm647, -1e+30, %v566
        %v649 = vsel %vm647, -1e+30, %v590
        %v650 = vsel %vm647, -1e+30, %v614
        %v651 = vsel %vm647, -1e+30, %v638
        %v652 = vsel %vm549, %v648, -inf
        %653 = vmax.xlane.f32.xlu0 %v652
        %v654 = vpop.xlane.xlu0 %653
        %v655 = vsel %vm549, %v649, -inf
        %656 = vmax.xlane.f32.xlu0 %v655
        %v657 = vpop.xlane.xlu0 %656
        %v658 = vsel %vm549, %v650, -inf
        %659 = vmax.xlane.f32.xlu0 %v658
        %v660 = vpop.xlane.xlu0 %659
        %v661 = vsel %vm549, %v651, -inf
        %662 = vmax.xlane.f32.xlu0 %v661
        %v663 = vpop.xlane.xlu0 %662
        %v664 = vsub.f32 %v648, %v654
        %v665 = vsub.f32 %v649, %v657
        %v666 = vsub.f32 %v650, %v660
        %v667 = vsub.f32 %v651, %v663
        %v668 = vmul.f32 %v664, 1.442695
        %v669 = vpow.pop %v668
        %v670 = vmul.f32 %v665, 1.442695
        %v671 = vpow.pop %v670
        %v672 = vmul.f32 %v666, 1.442695
        %v673 = vpow.pop %v672
        %v674 = vmul.f32 %v667, 1.442695
        %v675 = vpow.pop %v674
        %v676 = vsel %vm549, %v669, 0.0
        %677 = vadd.xlane.f32.xlu0 %v676
        %v678 = vpop.xlane.xlu0 %677
        %v679 = vsel %vm549, %v671, 0.0
        %680 = vadd.xlane.f32.xlu0 %v679
        %v681 = vpop.xlane.xlu0 %680
        %v682 = vsel %vm549, %v673, 0.0
        %683 = vadd.xlane.f32.xlu0 %v682
        %v684 = vpop.xlane.xlu0 %683
        %v685 = vsel %vm549, %v675, 0.0
        %686 = vadd.xlane.f32.xlu0 %v685
        %v687 = vpop.xlane.xlu0 %686
        %v688 = vrcp.pop %v678
        %v689 = vrcp.pop %v681
        %v690 = vrcp.pop %v684
        %v691 = vrcp.pop %v687
        %v692 = vmul.f32 %v669, %v688
        %v693 = vmul.f32 %v671, %v689
        %v694 = vmul.f32 %v673, %v690
        %v695 = vmul.f32 %v675, %v691
        %v696 = vpack.c.bf16 %v692, %v692
        %v697 = vpack.c.bf16 %v693, %v693
        %v698 = vpack.c.bf16 %v694, %v694
        %v699 = vpack.c.bf16 %v695, %v695
        %700 = vrot.lane.b32.xlu0 %v546, 64
        %v701 = vpop.permute.xlu0 %700
        %v703 = vsel %vm549, %v696, 0
        %vm705 = vcmask 1043456
        %v707 = vsel %vm705, %v701, 0
        %709 = vmatpush.bf16.msra.mxu0 0
        %710 = vmatpush.bf16.msra.mxu0 0
        %711 = vmatpush.bf16.msra.mxu0 0
        %712 = vmatpush.bf16.msra.mxu0 0
        %713 = vmatpush.bf16.msra.mxu0 0
        %714 = vmatpush.bf16.msra.mxu0 0
        %715 = vmatpush.bf16.msra.mxu0 0
        %716 = vmatpush.bf16.msra.mxu0 %v707
        %717 = vmatmul.bf16.gmra.mxu0 %v703
        %v718 = vpop.f32.mrf.mxu0
        %v719 = vadd.f32 0.0, %v718
        %v720 = vpop.f32.mrf.mxu0
        %721 = vdwg.mxu0
        %722 = vrot.lane.b32.xlu0 %v571, 64
        %v723 = vpop.permute.xlu0 %722
        %v725 = vsel %vm549, %v697, 0
        %v728 = vsel %vm705, %v723, 0
        %730 = vmatpush.bf16.msra.mxu0 0
        %731 = vmatpush.bf16.msra.mxu0 0
        %732 = vmatpush.bf16.msra.mxu0 0
        %733 = vmatpush.bf16.msra.mxu0 0
        %734 = vmatpush.bf16.msra.mxu0 0
        %735 = vmatpush.bf16.msra.mxu0 0
        %736 = vmatpush.bf16.msra.mxu0 0
        %737 = vmatpush.bf16.msra.mxu0 %v728
        %738 = vmatmul.bf16.gmra.mxu0 %v725
        %v739 = vpop.f32.mrf.mxu0
        %v740 = vadd.f32 0.0, %v739
        %v741 = vpop.f32.mrf.mxu0
        %742 = vdwg.mxu0
        %743 = vrot.lane.b32.xlu0 %v595, 64
        %v744 = vpop.permute.xlu0 %743
        %v746 = vsel %vm549, %v698, 0
        %v749 = vsel %vm705, %v744, 0
        %751 = vmatpush.bf16.msra.mxu0 0
        %752 = vmatpush.bf16.msra.mxu0 0
        %753 = vmatpush.bf16.msra.mxu0 0
        %754 = vmatpush.bf16.msra.mxu0 0
        %755 = vmatpush.bf16.msra.mxu0 0
        %756 = vmatpush.bf16.msra.mxu0 0
        %757 = vmatpush.bf16.msra.mxu0 0
        %758 = vmatpush.bf16.msra.mxu0 %v749
        %759 = vmatmul.bf16.gmra.mxu0 %v746
        %v760 = vpop.f32.mrf.mxu0
        %v761 = vadd.f32 0.0, %v760
        %v762 = vpop.f32.mrf.mxu0
        %763 = vdwg.mxu0
        %764 = vrot.lane.b32.xlu0 %v619, 64
        %v765 = vpop.permute.xlu0 %764
        %v767 = vsel %vm549, %v699, 0
        %v770 = vsel %vm705, %v765, 0
        %772 = vmatpush.bf16.msra.mxu0 0
        %773 = vmatpush.bf16.msra.mxu0 0
        %774 = vmatpush.bf16.msra.mxu0 0
        %775 = vmatpush.bf16.msra.mxu0 0
        %776 = vmatpush.bf16.msra.mxu0 0
        %777 = vmatpush.bf16.msra.mxu0 0
        %778 = vmatpush.bf16.msra.mxu0 0
        %779 = vmatpush.bf16.msra.mxu0 %v770
        %780 = vmatmul.bf16.gmra.mxu0 %v767
        %v781 = vpop.f32.mrf.mxu0
        %v782 = vadd.f32 0.0, %v781
        %v783 = vpop.f32.mrf.mxu0
        %784 = vdwg.mxu0
        %786 = vrot.lane.b32.xlu0 %v740, 8
        %v787 = vpop.permute.xlu0 %786
        %790 = vrot.lane.b32.xlu0 %v761, 16
        %v791 = vpop.permute.xlu0 %790
        %794 = vrot.lane.b32.xlu0 %v782, 24
        %v795 = vpop.permute.xlu0 %794
        %v797 = vsel %vm549, %v719, %v787
        %vm798 = vcmask 130048
        %v799 = vsel %vm798, %v797, %v791
        %vm800 = vcmask 195584
        %v801 = vsel %vm800, %v799, %v795
        %v802 = vpack.c.bf16 %v801, %v801
        %v803 = vld [vmem:[%s5] sm:$0xf]
        %v804 = vld [vmem:[%s5 + $0x4] sm:$0xf]
        %v805 = vld [vmem:[%s5 + $0x8] sm:$0xf]
        %v806 = vld [vmem:[%s5 + $0xc] sm:$0xf]
        %v807 = vld [vmem:[%s6] sm:$0x1]
        %v809 = vperm.slane %v807, 0
        %v815 = vunpack.c.l.b16 %v803
        %v816 = vunpack.c.l.b16 %v804
        %v817 = vunpack.c.l.b16 %v805
        %v818 = vunpack.c.l.b16 %v806
        %v819 = vpack.c.b16 %v816, %v815
        %v820 = vpack.c.b16 %v818, %v817
        %v824 = vsel %vm438, %v802, 0
        %826 = vmatpush.bf16.msra.mxu0 0
        %827 = vmatpush.bf16.msra.mxu0 0
        %828 = vmatpush.bf16.msra.mxu0 0
        %829 = vmatpush.bf16.msra.mxu0 0
        %830 = vmatpush.bf16.msra.mxu0 0
        %831 = vmatpush.bf16.msra.mxu0 0
        %832 = vmatpush.bf16.msra.mxu0 %v820
        %833 = vmatpush.bf16.msra.mxu0 %v819
        %834 = vmatmul.bf16.gmra.mxu0 %v824
        %v835 = vpop.f32.mrf.mxu0
        %v836 = vadd.f32 %v809, %v835
        %v837 = vpop.f32.mrf.mxu0
        %838 = vdwg.mxu0
        %v839 = vadd.f32 %v836, %v437
        %v840 = vsel %vm438, %v839, 0.0
        %841 = vadd.xlane.f32.xlu0 %v840
        %v842 = vpop.xlane.xlu0 %841
        %v843 = vmul.f32 %v842, %v448
        %v844 = vsub.f32 %v839, %v843
        %v845 = vmul.f32 %v844, %v844
        %v846 = vsel %vm438, %v845, 0.0
        %847 = vadd.xlane.f32.xlu0 %v846
        %v848 = vpop.xlane.xlu0 %847
        %v849 = vmul.f32 %v848, %v448
        %v850 = vadd.f32 %v849, 1e-05
        %v851 = vrsqrt.pop %v850
        %v852 = vmul.f32 %v851, %v850
        %v853 = vmul.f32 %v852, %v851
        %v854 = vmul.f32 0.5, %v853
        %v855 = vsub.f32 1.5, %v854
        %v856 = vmul.f32 %v851, %v855
        %vm857 = vweird.f32 %v850
        %vm858 = vweird.f32 %v851
        %vm859 = vmor %vm857, %vm858
        %v860 = vsel %vm859, %v851, %v856
        %v861 = vmul.f32 %v844, %v860
        %v862 = vld [vmem:[%s7] sm:$0x1]
        %v864 = vperm.slane %v862, 0
        %v866 = vmul.f32 %v861, %v864
        %v867 = vld [vmem:[%s8] sm:$0x1]
        %v869 = vperm.slane %v867, 0
        %v871 = vadd.f32 %v866, %v869
        %v872 = vpack.c.bf16 %v871, %v871
        %v873 = vld [vmem:[%s9] sm:$0xf]
        %v874 = vld [vmem:[%s9 + $0x4] sm:$0xf]
        %v875 = vld [vmem:[%s9 + $0x8] sm:$0xf]
        %v876 = vld [vmem:[%s9 + $0xc] sm:$0xf]
        %v877 = vld [vmem:[%s10] sm:$0x1]
        %v879 = vperm.slane %v877, 0
        %v885 = vunpack.c.l.b16 %v873
        %v886 = vunpack.c.l.b16 %v874
        %v887 = vunpack.c.l.b16 %v875
        %v888 = vunpack.c.l.b16 %v876
        %v889 = vpack.c.b16 %v886, %v885
        %v890 = vpack.c.b16 %v888, %v887
        %v894 = vsel %vm438, %v872, 0
        %896 = vmatpush.bf16.msra.mxu0 0
        %897 = vmatpush.bf16.msra.mxu0 0
        %898 = vmatpush.bf16.msra.mxu0 0
        %899 = vmatpush.bf16.msra.mxu0 0
        %900 = vmatpush.bf16.msra.mxu0 0
        %901 = vmatpush.bf16.msra.mxu0 0
        %902 = vmatpush.bf16.msra.mxu0 %v890
        %903 = vmatpush.bf16.msra.mxu0 %v889
        %904 = vmatmul.bf16.gmra.mxu0 %v894
        %v905 = vpop.f32.mrf.mxu0
        %v906 = vadd.f32 %v879, %v905
        %v907 = vpop.f32.mrf.mxu0
        %908 = vdwg.mxu0
        %v909 = vmul.f32 %v906, 0.5
        %v910 = vmul.f32 %v906, %v906
        %v911 = vmul.f32 %v910, %v906
        %v912 = vmul.f32 %v911, 0.044715
        %v913 = vadd.f32 %v906, %v912
        %v914 = vmul.f32 %v913, 0.7978846
        %v915 = vtanh.pop %v914
        %v916 = vadd.f32 %v915, 1.0
        %v917 = vmul.f32 %v909, %v916
        %v918 = vpack.c.bf16 %v917, %v917
        %v919 = vld [vmem:[%s11] sm:$0xf]
        %v920 = vld [vmem:[%s11 + $0x4] sm:$0xf]
        %v921 = vld [vmem:[%s11 + $0x8] sm:$0xf]
        %v922 = vld [vmem:[%s11 + $0xc] sm:$0xf]
        %v923 = vld [vmem:[%s11 + $0x10] sm:$0xf]
        %v924 = vld [vmem:[%s11 + $0x14] sm:$0xf]
        %v925 = vld [vmem:[%s11 + $0x18] sm:$0xf]
        %v926 = vld [vmem:[%s11 + $0x1c] sm:$0xf]
        %v927 = vld [vmem:[%s11 + $0x20] sm:$0xf]
        %v928 = vld [vmem:[%s11 + $0x24] sm:$0xf]
        %v929 = vld [vmem:[%s11 + $0x28] sm:$0xf]
        %v930 = vld [vmem:[%s11 + $0x2c] sm:$0xf]
        %v931 = vld [vmem:[%s11 + $0x30] sm:$0xf]
        %v932 = vld [vmem:[%s11 + $0x34] sm:$0xf]
        %v933 = vld [vmem:[%s11 + $0x38] sm:$0xf]
        %v934 = vld [vmem:[%s11 + $0x3c] sm:$0xf]
        %v935 = vld [vmem:[%s12] sm:$0x1]
        %v937 = vperm.slane %v935, 0
        %v955 = vunpack.c.l.b16 %v919
        %v956 = vunpack.c.l.b16 %v920
        %v957 = vunpack.c.l.b16 %v921
        %v958 = vunpack.c.l.b16 %v922
        %v959 = vunpack.c.l.b16 %v923
        %v960 = vunpack.c.l.b16 %v924
        %v961 = vunpack.c.l.b16 %v925
        %v962 = vunpack.c.l.b16 %v926
        %v963 = vunpack.c.l.b16 %v927
        %v964 = vunpack.c.l.b16 %v928
        %v965 = vunpack.c.l.b16 %v929
        %v966 = vunpack.c.l.b16 %v930
        %v967 = vunpack.c.l.b16 %v931
        %v968 = vunpack.c.l.b16 %v932
        %v969 = vunpack.c.l.b16 %v933
        %v970 = vunpack.c.l.b16 %v934
        %v971 = vpack.c.b16 %v956, %v955
        %v972 = vpack.c.b16 %v958, %v957
        %v973 = vpack.c.b16 %v960, %v959
        %v974 = vpack.c.b16 %v962, %v961
        %v975 = vpack.c.b16 %v964, %v963
        %v976 = vpack.c.b16 %v966, %v965
        %v977 = vpack.c.b16 %v968, %v967
        %v978 = vpack.c.b16 %v970, %v969
        %987 = vmatpush.bf16.msra.mxu0 %v978
        %988 = vmatpush.bf16.msra.mxu0 %v977
        %989 = vmatpush.bf16.msra.mxu0 %v976
        %990 = vmatpush.bf16.msra.mxu0 %v975
        %991 = vmatpush.bf16.msra.mxu0 %v974
        %992 = vmatpush.bf16.msra.mxu0 %v973
        %993 = vmatpush.bf16.msra.mxu0 %v972
        %994 = vmatpush.bf16.msra.mxu0 %v971
        %995 = vmatmul.bf16.gmra.mxu0 %v918
        %v996 = vpop.f32.mrf.mxu0
        %v997 = vadd.f32 %v937, %v996
        %v998 = vpop.f32.mrf.mxu0
        %999 = vdwg.mxu0
        %v1000 = vadd.f32 %v997, %v839
        %1001 = vst.msk [vmem:[%s431] sm:$0xff] %vm438, %v1000
        %s1002 = sand.u32 %s313, 1
        %s1003 = scalar_lea.sflag [#allocation3], %s1002
        %s1004 = sand.u32 %s313, 1
        %s1005 = smul.addr %s1004, 8
        %s1006 = scalar_lea.vmem [#allocation2], %s1005
        // Predicated region
        $region73: #{fn.1} parent=71 // pred_check
          %p1007 = pneg %p323
        $region74: #{fn.1} parent=71 // pred_check_branch
          %1009 = sbr.rel (%p1007) target = $region76
        $region75: #{fn.1} parent=71 // pred_region
          %1011 = vsyncadd %s1003, 0
          %s1012 = smul.addr %s27, 8
          %s1013 = scalar_lea.hbm %s13, %s1012
          %s1015 = sshll.u32 %s1006, 4
          %s1016 = int_to_ptr.vmem [resolvable:$true] %s1015
          %s1017 = sshll.u32 %s1013, 4
          %s1018 = int_to_ptr.hbm [resolvable:$true] %s1017
          %1020 = dma.vmem_to_hbm [thread:$0]  %s1016, 128, %s1018, %s1003
        $region76: #{fn.1} parent=71 // pred_fallthru
          _
      $region72: #{fn.1} parent=5 // pred_fallthru
        _
      %p1021 = scmp.le.s32.totalorder 2, %s22
      // Predicated region
      $region77: #{fn.1} parent=5 // pred_check
        %p1022 = pneg %p1021
      $region78: #{fn.1} parent=5 // pred_check_branch
        %1024 = sbr.rel (%p1022) target = $region80
      $region79: #{fn.1} parent=5 // pred_region
        %s1025 = ssub.s32 %s22, 2
        // Predicated region
        $region81: #{fn.1} parent=79 // pred_check
          %p1026 = pneg %p329
        $region82: #{fn.1} parent=79 // pred_check_branch
          %1028 = sbr.rel (%p1026) target = $region84
        $region83: #{fn.1} parent=79 // pred_region
          %s1029 = sand.u32 %s314, 1
          %s1030 = scalar_lea.sflag [#allocation3], %s1029
          %s1031 = sand.u32 %s314, 1
          %s1032 = smul.addr %s1031, 8
          %s1033 = scalar_lea.vmem [#allocation2], %s1032
          %1035 = dma.done %s1030, 128
        $region84: #{fn.1} parent=79 // pred_fallthru
          _
      $region80: #{fn.1} parent=5 // pred_fallthru
        _
    $region6: #{fn.1} parent=1 // loop_footer
      %s26 = sadd.s32 1, %s22
    $region7: #{fn.1} parent=1 // loop_footer_branch
      %21 = sbr.rel target = $region3
    $region8: #{fn.1} parent=1 // loop_exit
      _
    %1036 = vsyncpa [#allocation3], 1
    %s1037 = scalar_lea.sflag [#allocation3], 1
    %1038 = vsyncpa %s1037, 1

</llo_original>
